<compile_context>
chip_gen: v7x
topology: tpu7x:2x2x1
jax: 0.10.0
libtpu: 0.0.40
codegen_flags: <defaults>
</compile_context>

<pallas_src>
import functools
import math

import jax
import jax.numpy as jnp
import numpy as np
from jax.experimental import pallas as pl
from jax.experimental.pallas import tpu as pltpu


def _mha_kernel(*refs, n_heads, head_dim, block_b, has_mask):
    if has_mask:
        (q_ref, k_ref, v_ref, bias_ref,
         wq_ref, wk_ref, wv_ref, wo_ref, bo_ref,
         out_ref, attn_ref) = refs
    else:
        (q_ref, k_ref, v_ref,
         wq_ref, wk_ref, wv_ref, wo_ref, bo_ref,
         out_ref, attn_ref) = refs
        bias_ref = None

    H, dh, bb = n_heads, head_dim, block_b
    T = q_ref.shape[1]
    Ts = k_ref.shape[1]
    D = q_ref.shape[2]
    out_dim = out_ref.shape[2]

    # ---- fused, lane-dense projections over every packed batch row -----------
    # Leading-dim merges only (T, Ts are multiples of 8 -> layout preserving).
    q2 = q_ref[...].reshape(bb * T, D)
    k2 = k_ref[...].reshape(bb * Ts, D)
    v2 = v_ref[...].reshape(bb * Ts, D)

    qp = jnp.dot(q2, wq_ref[...], preferred_element_type=jnp.float32)  # scale folded into Wq
    kp = jnp.dot(k2, wk_ref[...], preferred_element_type=jnp.float32)
    vp = jnp.dot(v2, wv_ref[...], preferred_element_type=jnp.float32)
    # One bf16 cast site per projection (keeps f32 VALU pressure low, esp. v5e).
    qp = qp.astype(jnp.bfloat16).reshape(bb, T, D)
    kp = kp.astype(jnp.bfloat16).reshape(bb, Ts, D)
    vp = vp.astype(jnp.bfloat16).reshape(bb, Ts, D)

    if has_mask:
        # Additive bias (0 keep / -1e9 drop) prepared in the wrapper: no integer
        # compare + select on the VPU; shipped as bf16, not int32.
        bias = bias_ref[...].astype(jnp.float32)                  # (bb, T, Ts)

    z_heads = []
    # Static loop over heads only (H is small). Each einsum below is batched
    # over all bb packed batch rows; per-head intermediates are retired by the
    # attn store every iteration, so live-range growth stays bounded.
    for h in range(H):
        sl = slice(h * dh, (h + 1) * dh)
        s = jnp.einsum('btd,bsd->bts', qp[:, :, sl], kp[:, :, sl],
                       preferred_element_type=jnp.float32)        # (bb, T, Ts) f32
        if has_mask:
            s = s + bias
        s_max = jnp.max(s, axis=-1, keepdims=True)
        e = jnp.exp(s - s_max)
        denom = jnp.sum(e, axis=-1, keepdims=True)
        a = e * pl.reciprocal(denom, approx=True)                 # EUP, not a VALU divide
        # TODO(synk): attn_dropout is identity for p=0.0 / eval mode; dropout not implemented.
        # NOTE: for production Ts >= 128 this store is already lane-dense; at the
        # toy Ts=16 a lane-dense flatten would need a minor-dim reshape (relayout).
        attn_ref[:, h, :, :] = a.astype(attn_ref.dtype)
        z_heads.append(
            jnp.einsum('bts,bsd->btd', a.astype(jnp.bfloat16), vp[:, :, sl],
                       preferred_element_type=jnp.float32).astype(jnp.bfloat16))

    # ---- heads folded into a single output-projection matmul -----------------
    # z laid out (bb*T, H*dh) with heads contiguous in lanes; Wo is one
    # (H*dh, out_dim) matrix, so the head-sum happens in the MXU f32 accumulator.
    z = jnp.concatenate(z_heads, axis=-1).reshape(bb * T, H * dh)
    out = jnp.dot(z, wo_ref[...], preferred_element_type=jnp.float32) + bo_ref[...]
    out_ref[...] = out.reshape(bb, T, out_dim).astype(out_ref.dtype)


def _pick_block_batch(B, T, Ts, D, H, out_dim, attn_bytes, has_mask):
    """Pick batch rows per grid step from a conservative VMEM budget (v5e's
    16 MiB scoped default is the tightest; v7x has only 64 MiB physical VMEM),
    and keep the grid length >= 2 whenever B allows it so the "parallel" batch
    axis can shard across TensorCores (v7x) and the pipeline overlaps DMA with
    compute."""
    per_b = 2 * (                              # x2: double-buffered pipeline copies
        (T * D + 2 * Ts * D) * 2               # q, k, v blocks (bf16)
        + (T * Ts * 2 if has_mask else 0)      # additive mask bias (bf16)
        + T * out_dim * 4                      # out block (f32)
        + H * T * Ts * attn_bytes)             # attn block
    budget = 8 * 1024 * 1024
    bb = int(max(1, min(B, 8, budget // max(per_b, 1))))
    while bb > 1 and -(-B // bb) < 2:
        bb = max(1, bb // 2)
    return bb


def multi_head_attention(queries, keys, values, params, n_heads, mask=None,
                         attn_dtype=jnp.bfloat16):
    """Pallas implementation of MultiHeadAttention.forward (attn_dropout == 0).

    queries: (B, T, in_dim); keys/values: (B, Ts, in_dim); optional mask
    (B, T, Ts), nonzero = keep.  Returns (out, attn): out (B, T, out_dim) f32,
    attn (B, n_heads, T, Ts) in `attn_dtype` (bf16 default halves the largest
    HBM writeback; pass jnp.float32 for dtype parity with the PyTorch module).
    """
    in_dim = queries.shape[-1]
    D = params["wq"].shape[0]                       # multi_head_dim
    pad = D - in_dim
    if pad > 0:
        queries = jnp.pad(queries, ((0, 0), (0, 0), (0, pad)))
        keys = jnp.pad(keys, ((0, 0), (0, 0), (0, pad)))
        values = jnp.pad(values, ((0, 0), (0, 0), (0, pad)))

    B, T, _ = queries.shape
    Ts = keys.shape[1]
    out_dim = params["wo"].shape[0]
    H = n_heads
    dh = D // H

    # --- one-time weight prep in plain JAX (HBM side, reused every step) -------
    scale = 1.0 / math.sqrt(dh)
    wq = (params["wq"].T * scale).astype(jnp.bfloat16)     # (D, D), scale folded in
    wk = params["wk"].T.astype(jnp.bfloat16)               # (D, D)
    wv = params["wv"].T.astype(jnp.bfloat16)               # (D, D)
    wo = params["wo"].T.astype(jnp.bfloat16)               # (H*dh, out_dim) -> head-sum in MXU
    bo = params["bo"].reshape(1, out_dim).astype(jnp.float32)

    # bf16 activations: half the HBM->VMEM DMA; every dot accumulates in f32.
    q_bf = queries.astype(jnp.bfloat16)
    k_bf = keys.astype(jnp.bfloat16)
    v_bf = values.astype(jnp.bfloat16)

    has_mask = mask is not None
    if has_mask:
        bias = jnp.where(mask > 0, 0.0, -1.0e9).astype(jnp.bfloat16)

    attn_bytes = jnp.dtype(attn_dtype).itemsize
    bb = _pick_block_batch(B, T, Ts, D, H, out_dim, attn_bytes, has_mask)
    B_pad = -(-B // bb) * bb
    if B_pad != B:
        extra = B_pad - B
        q_bf = jnp.pad(q_bf, ((0, extra), (0, 0), (0, 0)))
        k_bf = jnp.pad(k_bf, ((0, extra), (0, 0), (0, 0)))
        v_bf = jnp.pad(v_bf, ((0, extra), (0, 0), (0, 0)))
        if has_mask:
            bias = jnp.pad(bias, ((0, extra), (0, 0), (0, 0)))   # 0.0 == keep
    grid = (B_pad // bb,)

    kernel = functools.partial(_mha_kernel, n_heads=H, head_dim=dh,
                               block_b=bb, has_mask=has_mask)

    in_specs = [
        pl.BlockSpec((bb, T, D), lambda i: (i, 0, 0)),        # queries
        pl.BlockSpec((bb, Ts, D), lambda i: (i, 0, 0)),       # keys
        pl.BlockSpec((bb, Ts, D), lambda i: (i, 0, 0)),       # values
    ]
    args = [q_bf, k_bf, v_bf]
    if has_mask:
        in_specs.append(pl.BlockSpec((bb, T, Ts), lambda i: (i, 0, 0)))
        args.append(bias)
    # Grid-invariant weights (constant index_map -> not re-fetched per step).
    # TODO(synk): single-buffer these (pipeline_mode=pl.Buffered(1)) once their
    # size matters; negligible VMEM at D=32 / out_dim=16.
    in_specs += [
        pl.BlockSpec((D, D), lambda i: (0, 0)),               # Wq (scaled)
        pl.BlockSpec((D, D), lambda i: (0, 0)),               # Wk
        pl.BlockSpec((D, D), lambda i: (0, 0)),               # Wv
        pl.BlockSpec((D, out_dim), lambda i: (0, 0)),         # Wo
        pl.BlockSpec((1, out_dim), lambda i: (0, 0)),         # bo
    ]
    args += [wq, wk, wv, wo, bo]

    out, attn = pl.pallas_call(
        kernel,
        out_shape=(
            jax.ShapeDtypeStruct((B_pad, T, out_dim), jnp.float32),
            jax.ShapeDtypeStruct((B_pad, H, T, Ts), attn_dtype),
        ),
        grid_spec=pltpu.PrefetchScalarGridSpec(
            num_scalar_prefetch=0,
            grid=grid,
            in_specs=in_specs,
            out_specs=(
                pl.BlockSpec((bb, T, out_dim), lambda i: (i, 0, 0)),
                pl.BlockSpec((bb, H, T, Ts), lambda i: (i, 0, 0, 0)),
            ),
        ),
        # Batch axis is independent -> "parallel" (shards across the 2 TCs on
        # v7x; _pick_block_batch keeps the grid length >= 2 when B allows it).
        # For large T/Ts, add a query-tile grid axis and set vmem_limit_bytes
        # per generation (64 MiB physical VMEM on v7x vs 128 MiB on v5e/v6e).
        compiler_params=pltpu.CompilerParams(dimension_semantics=("parallel",)),
    )(*args)

    if B_pad != B:
        out = out[:B]
        attn = attn[:B]
    return out, attn


def reference_mha(queries, keys, values, params, n_heads, mask=None):
    """Pure-JAX f32 reference mirroring the PyTorch forward (dropout=0)."""
    in_dim = queries.shape[-1]
    mhd = params["wq"].shape[0]
    pad = mhd - in_dim
    q = jnp.pad(queries, ((0, 0), (0, 0), (0, pad)))
    k = jnp.pad(keys, ((0, 0), (0, 0), (0, pad)))
    v = jnp.pad(values, ((0, 0), (0, 0), (0, pad)))
    B, T, _ = q.shape
    Ts = k.shape[1]
    qp = (q @ params["wq"].T).reshape(B, T, n_heads, -1).transpose(0, 2, 1, 3)
    kp = (k @ params["wk"].T).reshape(B, Ts, n_heads, -1).transpose(0, 2, 1, 3)
    vp = (v @ params["wv"].T).reshape(B, Ts, n_heads, -1).transpose(0, 2, 1, 3)
    dh = kp.shape[-1]
    attn = (qp @ kp.transpose(0, 1, 3, 2)) / np.sqrt(dh)
    if mask is not None:
        attn = jnp.where(mask[:, None, :, :] > 0, attn, -1.0e9)
    attn = jax.nn.softmax(attn, axis=-1)
    z = (attn @ vp).transpose(0, 2, 1, 3).reshape(B, T, -1)
    out = z @ params["wo"].T + params["bo"]
    return out, attn


if __name__ == "__main__":
    # Small shapes consistent with the module's forward.
    B, T, Ts = 2, 8, 16
    in_dim, out_dim, n_heads = 30, 16, 4
    mhd = (in_dim + n_heads - 1) // n_heads * n_heads   # 32 (pad_dim = 2)

    key = jax.random.PRNGKey(0)
    kq, kk, kv, k1, k2, k3, k4, km = jax.random.split(key, 8)

    queries = jax.random.normal(kq, (B, T, in_dim), jnp.float32)
    keys_in = jax.random.normal(kk, (B, Ts, in_dim), jnp.float32)
    values = jax.random.normal(kv, (B, Ts, in_dim), jnp.float32)

    s = 1.0 / math.sqrt(mhd)
    params = dict(
        wq=jax.random.uniform(k1, (mhd, mhd), jnp.float32, -s, s),
        wk=jax.random.uniform(k2, (mhd, mhd), jnp.float32, -s, s),
        wv=jax.random.uniform(k3, (mhd, mhd), jnp.float32, -s, s),
        wo=jax.random.uniform(k4, (out_dim, mhd), jnp.float32, -s, s),
        bo=jnp.zeros((out_dim,), jnp.float32),   # nn.init.zeros_(self.Wo.bias)
    )

    # bf16 MXU inputs with f32 accumulation (and bf16 attn output) -> compare
    # against the f32 reference with relaxed tolerances; real bugs are O(1).
    OUT_TOL = dict(rtol=5e-2, atol=1e-1)
    ATTN_TOL = dict(rtol=5e-2, atol=5e-2)

    # 1) mask=None path (no-bias kernel variant).
    out, attn = multi_head_attention(queries, keys_in, values, params, n_heads, mask=None)
    out, attn = jax.block_until_ready((out, attn))
    ref_out, ref_attn = reference_mha(queries, keys_in, values, params, n_heads, mask=None)
    np.testing.assert_allclose(np.asarray(out), np.asarray(ref_out), **OUT_TOL)
    np.testing.assert_allclose(np.asarray(attn.astype(jnp.float32)),
                               np.asarray(ref_attn), **ATTN_TOL)

    # 2) masked path (additive-bias kernel variant).
    mask = (jax.random.uniform(km, (B, T, Ts)) < 0.7).astype(jnp.int32)
    out_m, attn_m = multi_head_attention(queries, keys_in, values, params, n_heads, mask=mask)
    out_m, attn_m = jax.block_until_ready((out_m, attn_m))
    ref_out_m, ref_attn_m = reference_mha(queries, keys_in, values, params, n_heads, mask=mask)
    np.testing.assert_allclose(np.asarray(out_m), np.asarray(ref_out_m), **OUT_TOL)
    np.testing.assert_allclose(np.asarray(attn_m.astype(jnp.float32)),
                               np.asarray(ref_attn_m), **ATTN_TOL)

    print("KERNEL_OK")
</pallas_src>

<mosaic_0001>
module attributes {stable_mosaic.version = 11 : i64} {
  func.func @_mha_kernel(%arg0: i32, %arg1: memref<1x8x32xbf16, #tpu.memory_space<vmem>>, %arg2: memref<1x16x32xbf16, #tpu.memory_space<vmem>>, %arg3: memref<1x16x32xbf16, #tpu.memory_space<vmem>>, %arg4: memref<32x32xbf16, #tpu.memory_space<vmem>>, %arg5: memref<32x32xbf16, #tpu.memory_space<vmem>>, %arg6: memref<32x32xbf16, #tpu.memory_space<vmem>>, %arg7: memref<32x16xbf16, #tpu.memory_space<vmem>>, %arg8: memref<1x16xf32, #tpu.memory_space<vmem>>, %arg9: memref<1x8x16xf32, #tpu.memory_space<vmem>>, %arg10: memref<1x4x8x16xbf16, #tpu.memory_space<vmem>>) attributes {dimension_semantics = [#tpu.dimension_semantics<parallel>], iteration_bounds = array<i64: 2>, scalar_prefetch = 0 : i64, scratch_operands = 0 : i64, tpu.core_type = #tpu.core_type<tc>, window_params = [{transform_indices = @transform_0, window_bounds = array<i64: 1, 8, 32>}, {transform_indices = @transform_1, window_bounds = array<i64: 1, 16, 32>}, {transform_indices = @transform_2, window_bounds = array<i64: 1, 16, 32>}, {pipeline_mode = #tpu.pipeline_mode<synchronous>, transform_indices = @transform_3, window_bounds = array<i64: 32, 32>}, {pipeline_mode = #tpu.pipeline_mode<synchronous>, transform_indices = @transform_4, window_bounds = array<i64: 32, 32>}, {pipeline_mode = #tpu.pipeline_mode<synchronous>, transform_indices = @transform_5, window_bounds = array<i64: 32, 32>}, {pipeline_mode = #tpu.pipeline_mode<synchronous>, transform_indices = @transform_6, window_bounds = array<i64: 32, 16>}, {pipeline_mode = #tpu.pipeline_mode<synchronous>, transform_indices = @transform_7, window_bounds = array<i64: 1, 16>}, {transform_indices = @transform_8, window_bounds = array<i64: 1, 8, 16>}, {transform_indices = @transform_9, window_bounds = array<i64: 1, 4, 8, 16>}]} {
    %c0 = arith.constant 0 : index
    %c0_0 = arith.constant 0 : index
    %c0_1 = arith.constant 0 : index
    %0 = vector.load %arg1[%c0, %c0_0, %c0_1] : memref<1x8x32xbf16, #tpu.memory_space<vmem>>, vector<1x8x32xbf16>
    %1 = vector.shape_cast %0 : vector<1x8x32xbf16> to vector<8x32xbf16>
    %c0_2 = arith.constant 0 : index
    %c0_3 = arith.constant 0 : index
    %c0_4 = arith.constant 0 : index
    %2 = vector.load %arg2[%c0_2, %c0_3, %c0_4] : memref<1x16x32xbf16, #tpu.memory_space<vmem>>, vector<1x16x32xbf16>
    %3 = vector.shape_cast %2 : vector<1x16x32xbf16> to vector<16x32xbf16>
    %c0_5 = arith.constant 0 : index
    %c0_6 = arith.constant 0 : index
    %c0_7 = arith.constant 0 : index
    %4 = vector.load %arg3[%c0_5, %c0_6, %c0_7] : memref<1x16x32xbf16, #tpu.memory_space<vmem>>, vector<1x16x32xbf16>
    %5 = vector.shape_cast %4 : vector<1x16x32xbf16> to vector<16x32xbf16>
    %c0_8 = arith.constant 0 : index
    %c0_9 = arith.constant 0 : index
    %6 = vector.load %arg4[%c0_8, %c0_9] : memref<32x32xbf16, #tpu.memory_space<vmem>>, vector<32x32xbf16>
    %cst = arith.constant dense<0.000000e+00> : vector<8x32xf32>
    %7 = tpu.matmul %1, %6, %cst {dimension_numbers = #tpu.dot_dimension_numbers<[1], [0], [0], [1], [0, 0, 1, 1], [], []>} : vector<8x32xbf16>, vector<32x32xbf16>, vector<8x32xf32> -> vector<8x32xf32>
    %c0_10 = arith.constant 0 : index
    %c0_11 = arith.constant 0 : index
    %8 = vector.load %arg5[%c0_10, %c0_11] : memref<32x32xbf16, #tpu.memory_space<vmem>>, vector<32x32xbf16>
    %cst_12 = arith.constant dense<0.000000e+00> : vector<16x32xf32>
    %9 = tpu.matmul %3, %8, %cst_12 {dimension_numbers = #tpu.dot_dimension_numbers<[1], [0], [0], [1], [0, 0, 1, 1], [], []>} : vector<16x32xbf16>, vector<32x32xbf16>, vector<16x32xf32> -> vector<16x32xf32>
    %c0_13 = arith.constant 0 : index
    %c0_14 = arith.constant 0 : index
    %10 = vector.load %arg6[%c0_13, %c0_14] : memref<32x32xbf16, #tpu.memory_space<vmem>>, vector<32x32xbf16>
    %cst_15 = arith.constant dense<0.000000e+00> : vector<16x32xf32>
    %11 = tpu.matmul %5, %10, %cst_15 {dimension_numbers = #tpu.dot_dimension_numbers<[1], [0], [0], [1], [0, 0, 1, 1], [], []>} : vector<16x32xbf16>, vector<32x32xbf16>, vector<16x32xf32> -> vector<16x32xf32>
    %12 = arith.truncf %7 : vector<8x32xf32> to vector<8x32xbf16>
    %13 = vector.shape_cast %12 : vector<8x32xbf16> to vector<1x8x32xbf16>
    %14 = arith.truncf %9 : vector<16x32xf32> to vector<16x32xbf16>
    %15 = vector.shape_cast %14 : vector<16x32xbf16> to vector<1x16x32xbf16>
    %16 = arith.truncf %11 : vector<16x32xf32> to vector<16x32xbf16>
    %17 = vector.shape_cast %16 : vector<16x32xbf16> to vector<1x16x32xbf16>
    %18 = vector.extract_strided_slice %13 {offsets = [0, 0, 0], sizes = [1, 8, 8], strides = [1, 1, 1]} : vector<1x8x32xbf16> to vector<1x8x8xbf16>
    %19 = vector.extract_strided_slice %15 {offsets = [0, 0, 0], sizes = [1, 16, 8], strides = [1, 1, 1]} : vector<1x16x32xbf16> to vector<1x16x8xbf16>
    "tpu.trace_start"() <{level = 10 : i32, message = "btd,bsd->bts"}> : () -> ()
    %cst_16 = arith.constant dense<0.000000e+00> : vector<1x8x16xf32>
    %20 = tpu.matmul %18, %19, %cst_16 {dimension_numbers = #tpu.dot_dimension_numbers<[2], [2], [1], [1], [0, 0, 0, 1, 1, 1], [0], [0]>} : vector<1x8x8xbf16>, vector<1x16x8xbf16>, vector<1x8x16xf32> -> vector<1x8x16xf32>
    "tpu.trace_stop"() : () -> ()
    %cst_17 = arith.constant dense<0xFF800000> : vector<1x8xf32>
    %21 = vector.multi_reduction <maximumf>, %20, %cst_17 [2] : vector<1x8x16xf32> to vector<1x8xf32>
    %22 = vector.shape_cast %21 : vector<1x8xf32> to vector<1x8x1xf32>
    %23 = vector.broadcast %22 : vector<1x8x1xf32> to vector<1x8x16xf32>
    %24 = arith.subf %20, %23 : vector<1x8x16xf32>
    %25 = math.exp %24 : vector<1x8x16xf32>
    %cst_18 = arith.constant dense<0.000000e+00> : vector<1x8xf32>
    %26 = vector.multi_reduction <add>, %25, %cst_18 [2] : vector<1x8x16xf32> to vector<1x8xf32>
    %27 = vector.shape_cast %26 : vector<1x8xf32> to vector<1x8x1xf32>
    %28 = tpu.reciprocal %27 {approx = true} : vector<1x8x1xf32> -> vector<1x8x1xf32>
    %29 = vector.broadcast %28 : vector<1x8x1xf32> to vector<1x8x16xf32>
    %30 = arith.mulf %25, %29 : vector<1x8x16xf32>
    %31 = arith.truncf %30 : vector<1x8x16xf32> to vector<1x8x16xbf16>
    %c0_19 = arith.constant 0 : index
    %c0_20 = arith.constant 0 : index
    %c0_21 = arith.constant 0 : index
    %c0_22 = arith.constant 0 : index
    %32 = vector.load %arg10[%c0_19, %c0_20, %c0_21, %c0_22] : memref<1x4x8x16xbf16, #tpu.memory_space<vmem>>, vector<1x1x8x16xbf16>
    %33 = vector.shape_cast %32 : vector<1x1x8x16xbf16> to vector<1x8x16xbf16>
    %34 = vector.shape_cast %31 : vector<1x8x16xbf16> to vector<1x1x8x16xbf16>
    tpu.vector_store %arg10[%c0_19, %c0_20, %c0_21, %c0_22], %34 {strides = array<i32>} : memref<1x4x8x16xbf16, #tpu.memory_space<vmem>>, vector<1x1x8x16xbf16>,
    %35 = arith.truncf %30 : vector<1x8x16xf32> to vector<1x8x16xbf16>
    %36 = vector.extract_strided_slice %17 {offsets = [0, 0, 0], sizes = [1, 16, 8], strides = [1, 1, 1]} : vector<1x16x32xbf16> to vector<1x16x8xbf16>
    "tpu.trace_start"() <{level = 10 : i32, message = "bts,bsd->btd"}> : () -> ()
    %cst_23 = arith.constant dense<0.000000e+00> : vector<1x8x8xf32>
    %37 = tpu.matmul %35, %36, %cst_23 {dimension_numbers = #tpu.dot_dimension_numbers<[2], [1], [1], [2], [0, 0, 0, 1, 1, 2], [0], [0]>} : vector<1x8x16xbf16>, vector<1x16x8xbf16>, vector<1x8x8xf32> -> vector<1x8x8xf32>
    "tpu.trace_stop"() : () -> ()
    %38 = arith.truncf %37 : vector<1x8x8xf32> to vector<1x8x8xbf16>
    %39 = vector.extract_strided_slice %13 {offsets = [0, 0, 8], sizes = [1, 8, 8], strides = [1, 1, 1]} : vector<1x8x32xbf16> to vector<1x8x8xbf16>
    %40 = vector.extract_strided_slice %15 {offsets = [0, 0, 8], sizes = [1, 16, 8], strides = [1, 1, 1]} : vector<1x16x32xbf16> to vector<1x16x8xbf16>
    "tpu.trace_start"() <{level = 10 : i32, message = "btd,bsd->bts"}> : () -> ()
    %cst_24 = arith.constant dense<0.000000e+00> : vector<1x8x16xf32>
    %41 = tpu.matmul %39, %40, %cst_24 {dimension_numbers = #tpu.dot_dimension_numbers<[2], [2], [1], [1], [0, 0, 0, 1, 1, 1], [0], [0]>} : vector<1x8x8xbf16>, vector<1x16x8xbf16>, vector<1x8x16xf32> -> vector<1x8x16xf32>
    "tpu.trace_stop"() : () -> ()
    %cst_25 = arith.constant dense<0xFF800000> : vector<1x8xf32>
    %42 = vector.multi_reduction <maximumf>, %41, %cst_25 [2] : vector<1x8x16xf32> to vector<1x8xf32>
    %43 = vector.shape_cast %42 : vector<1x8xf32> to vector<1x8x1xf32>
    %44 = vector.broadcast %43 : vector<1x8x1xf32> to vector<1x8x16xf32>
    %45 = arith.subf %41, %44 : vector<1x8x16xf32>
    %46 = math.exp %45 : vector<1x8x16xf32>
    %cst_26 = arith.constant dense<0.000000e+00> : vector<1x8xf32>
    %47 = vector.multi_reduction <add>, %46, %cst_26 [2] : vector<1x8x16xf32> to vector<1x8xf32>
    %48 = vector.shape_cast %47 : vector<1x8xf32> to vector<1x8x1xf32>
    %49 = tpu.reciprocal %48 {approx = true} : vector<1x8x1xf32> -> vector<1x8x1xf32>
    %50 = vector.broadcast %49 : vector<1x8x1xf32> to vector<1x8x16xf32>
    %51 = arith.mulf %46, %50 : vector<1x8x16xf32>
    %52 = arith.truncf %51 : vector<1x8x16xf32> to vector<1x8x16xbf16>
    %c0_27 = arith.constant 0 : index
    %c1 = arith.constant 1 : index
    %c0_28 = arith.constant 0 : index
    %c0_29 = arith.constant 0 : index
    %53 = vector.load %arg10[%c0_27, %c1, %c0_28, %c0_29] : memref<1x4x8x16xbf16, #tpu.memory_space<vmem>>, vector<1x1x8x16xbf16>
    %54 = vector.shape_cast %53 : vector<1x1x8x16xbf16> to vector<1x8x16xbf16>
    %55 = vector.shape_cast %52 : vector<1x8x16xbf16> to vector<1x1x8x16xbf16>
    tpu.vector_store %arg10[%c0_27, %c1, %c0_28, %c0_29], %55 {strides = array<i32>} : memref<1x4x8x16xbf16, #tpu.memory_space<vmem>>, vector<1x1x8x16xbf16>,
    %56 = arith.truncf %51 : vector<1x8x16xf32> to vector<1x8x16xbf16>
    %57 = vector.extract_strided_slice %17 {offsets = [0, 0, 8], sizes = [1, 16, 8], strides = [1, 1, 1]} : vector<1x16x32xbf16> to vector<1x16x8xbf16>
    "tpu.trace_start"() <{level = 10 : i32, message = "bts,bsd->btd"}> : () -> ()
    %cst_30 = arith.constant dense<0.000000e+00> : vector<1x8x8xf32>
    %58 = tpu.matmul %56, %57, %cst_30 {dimension_numbers = #tpu.dot_dimension_numbers<[2], [1], [1], [2], [0, 0, 0, 1, 1, 2], [0], [0]>} : vector<1x8x16xbf16>, vector<1x16x8xbf16>, vector<1x8x8xf32> -> vector<1x8x8xf32>
    "tpu.trace_stop"() : () -> ()
    %59 = arith.truncf %58 : vector<1x8x8xf32> to vector<1x8x8xbf16>
    %60 = vector.extract_strided_slice %13 {offsets = [0, 0, 16], sizes = [1, 8, 8], strides = [1, 1, 1]} : vector<1x8x32xbf16> to vector<1x8x8xbf16>
    %61 = vector.extract_strided_slice %15 {offsets = [0, 0, 16], sizes = [1, 16, 8], strides = [1, 1, 1]} : vector<1x16x32xbf16> to vector<1x16x8xbf16>
    "tpu.trace_start"() <{level = 10 : i32, message = "btd,bsd->bts"}> : () -> ()
    %cst_31 = arith.constant dense<0.000000e+00> : vector<1x8x16xf32>
    %62 = tpu.matmul %60, %61, %cst_31 {dimension_numbers = #tpu.dot_dimension_numbers<[2], [2], [1], [1], [0, 0, 0, 1, 1, 1], [0], [0]>} : vector<1x8x8xbf16>, vector<1x16x8xbf16>, vector<1x8x16xf32> -> vector<1x8x16xf32>
    "tpu.trace_stop"() : () -> ()
    %cst_32 = arith.constant dense<0xFF800000> : vector<1x8xf32>
    %63 = vector.multi_reduction <maximumf>, %62, %cst_32 [2] : vector<1x8x16xf32> to vector<1x8xf32>
    %64 = vector.shape_cast %63 : vector<1x8xf32> to vector<1x8x1xf32>
    %65 = vector.broadcast %64 : vector<1x8x1xf32> to vector<1x8x16xf32>
    %66 = arith.subf %62, %65 : vector<1x8x16xf32>
    %67 = math.exp %66 : vector<1x8x16xf32>
    %cst_33 = arith.constant dense<0.000000e+00> : vector<1x8xf32>
    %68 = vector.multi_reduction <add>, %67, %cst_33 [2] : vector<1x8x16xf32> to vector<1x8xf32>
    %69 = vector.shape_cast %68 : vector<1x8xf32> to vector<1x8x1xf32>
    %70 = tpu.reciprocal %69 {approx = true} : vector<1x8x1xf32> -> vector<1x8x1xf32>
    %71 = vector.broadcast %70 : vector<1x8x1xf32> to vector<1x8x16xf32>
    %72 = arith.mulf %67, %71 : vector<1x8x16xf32>
    %73 = arith.truncf %72 : vector<1x8x16xf32> to vector<1x8x16xbf16>
    %c0_34 = arith.constant 0 : index
    %c2 = arith.constant 2 : index
    %c0_35 = arith.constant 0 : index
    %c0_36 = arith.constant 0 : index
    %74 = vector.load %arg10[%c0_34, %c2, %c0_35, %c0_36] : memref<1x4x8x16xbf16, #tpu.memory_space<vmem>>, vector<1x1x8x16xbf16>
    %75 = vector.shape_cast %74 : vector<1x1x8x16xbf16> to vector<1x8x16xbf16>
    %76 = vector.shape_cast %73 : vector<1x8x16xbf16> to vector<1x1x8x16xbf16>
    tpu.vector_store %arg10[%c0_34, %c2, %c0_35, %c0_36], %76 {strides = array<i32>} : memref<1x4x8x16xbf16, #tpu.memory_space<vmem>>, vector<1x1x8x16xbf16>,
    %77 = arith.truncf %72 : vector<1x8x16xf32> to vector<1x8x16xbf16>
    %78 = vector.extract_strided_slice %17 {offsets = [0, 0, 16], sizes = [1, 16, 8], strides = [1, 1, 1]} : vector<1x16x32xbf16> to vector<1x16x8xbf16>
    "tpu.trace_start"() <{level = 10 : i32, message = "bts,bsd->btd"}> : () -> ()
    %cst_37 = arith.constant dense<0.000000e+00> : vector<1x8x8xf32>
    %79 = tpu.matmul %77, %78, %cst_37 {dimension_numbers = #tpu.dot_dimension_numbers<[2], [1], [1], [2], [0, 0, 0, 1, 1, 2], [0], [0]>} : vector<1x8x16xbf16>, vector<1x16x8xbf16>, vector<1x8x8xf32> -> vector<1x8x8xf32>
    "tpu.trace_stop"() : () -> ()
    %80 = arith.truncf %79 : vector<1x8x8xf32> to vector<1x8x8xbf16>
    %81 = vector.extract_strided_slice %13 {offsets = [0, 0, 24], sizes = [1, 8, 8], strides = [1, 1, 1]} : vector<1x8x32xbf16> to vector<1x8x8xbf16>
    %82 = vector.extract_strided_slice %15 {offsets = [0, 0, 24], sizes = [1, 16, 8], strides = [1, 1, 1]} : vector<1x16x32xbf16> to vector<1x16x8xbf16>
    "tpu.trace_start"() <{level = 10 : i32, message = "btd,bsd->bts"}> : () -> ()
    %cst_38 = arith.constant dense<0.000000e+00> : vector<1x8x16xf32>
    %83 = tpu.matmul %81, %82, %cst_38 {dimension_numbers = #tpu.dot_dimension_numbers<[2], [2], [1], [1], [0, 0, 0, 1, 1, 1], [0], [0]>} : vector<1x8x8xbf16>, vector<1x16x8xbf16>, vector<1x8x16xf32> -> vector<1x8x16xf32>
    "tpu.trace_stop"() : () -> ()
    %cst_39 = arith.constant dense<0xFF800000> : vector<1x8xf32>
    %84 = vector.multi_reduction <maximumf>, %83, %cst_39 [2] : vector<1x8x16xf32> to vector<1x8xf32>
    %85 = vector.shape_cast %84 : vector<1x8xf32> to vector<1x8x1xf32>
    %86 = vector.broadcast %85 : vector<1x8x1xf32> to vector<1x8x16xf32>
    %87 = arith.subf %83, %86 : vector<1x8x16xf32>
    %88 = math.exp %87 : vector<1x8x16xf32>
    %cst_40 = arith.constant dense<0.000000e+00> : vector<1x8xf32>
    %89 = vector.multi_reduction <add>, %88, %cst_40 [2] : vector<1x8x16xf32> to vector<1x8xf32>
    %90 = vector.shape_cast %89 : vector<1x8xf32> to vector<1x8x1xf32>
    %91 = tpu.reciprocal %90 {approx = true} : vector<1x8x1xf32> -> vector<1x8x1xf32>
    %92 = vector.broadcast %91 : vector<1x8x1xf32> to vector<1x8x16xf32>
    %93 = arith.mulf %88, %92 : vector<1x8x16xf32>
    %94 = arith.truncf %93 : vector<1x8x16xf32> to vector<1x8x16xbf16>
    %c0_41 = arith.constant 0 : index
    %c3 = arith.constant 3 : index
    %c0_42 = arith.constant 0 : index
    %c0_43 = arith.constant 0 : index
    %95 = vector.load %arg10[%c0_41, %c3, %c0_42, %c0_43] : memref<1x4x8x16xbf16, #tpu.memory_space<vmem>>, vector<1x1x8x16xbf16>
    %96 = vector.shape_cast %95 : vector<1x1x8x16xbf16> to vector<1x8x16xbf16>
    %97 = vector.shape_cast %94 : vector<1x8x16xbf16> to vector<1x1x8x16xbf16>
    tpu.vector_store %arg10[%c0_41, %c3, %c0_42, %c0_43], %97 {strides = array<i32>} : memref<1x4x8x16xbf16, #tpu.memory_space<vmem>>, vector<1x1x8x16xbf16>,
    %98 = arith.truncf %93 : vector<1x8x16xf32> to vector<1x8x16xbf16>
    %99 = vector.extract_strided_slice %17 {offsets = [0, 0, 24], sizes = [1, 16, 8], strides = [1, 1, 1]} : vector<1x16x32xbf16> to vector<1x16x8xbf16>
    "tpu.trace_start"() <{level = 10 : i32, message = "bts,bsd->btd"}> : () -> ()
    %cst_44 = arith.constant dense<0.000000e+00> : vector<1x8x8xf32>
    %100 = tpu.matmul %98, %99, %cst_44 {dimension_numbers = #tpu.dot_dimension_numbers<[2], [1], [1], [2], [0, 0, 0, 1, 1, 2], [0], [0]>} : vector<1x8x16xbf16>, vector<1x16x8xbf16>, vector<1x8x8xf32> -> vector<1x8x8xf32>
    "tpu.trace_stop"() : () -> ()
    %101 = arith.truncf %100 : vector<1x8x8xf32> to vector<1x8x8xbf16>
    %102 = tpu.concatenate %38, %59, %80, %101 in 2 : vector<1x8x8xbf16>, vector<1x8x8xbf16>, vector<1x8x8xbf16>, vector<1x8x8xbf16> -> vector<1x8x32xbf16>
    %103 = vector.shape_cast %102 : vector<1x8x32xbf16> to vector<8x32xbf16>
    %c0_45 = arith.constant 0 : index
    %c0_46 = arith.constant 0 : index
    %104 = vector.load %arg7[%c0_45, %c0_46] : memref<32x16xbf16, #tpu.memory_space<vmem>>, vector<32x16xbf16>
    %cst_47 = arith.constant dense<0.000000e+00> : vector<8x16xf32>
    %105 = tpu.matmul %103, %104, %cst_47 {dimension_numbers = #tpu.dot_dimension_numbers<[1], [0], [0], [1], [0, 0, 1, 1], [], []>} : vector<8x32xbf16>, vector<32x16xbf16>, vector<8x16xf32> -> vector<8x16xf32>
    %c0_48 = arith.constant 0 : index
    %c0_49 = arith.constant 0 : index
    %106 = vector.load %arg8[%c0_48, %c0_49] : memref<1x16xf32, #tpu.memory_space<vmem>>, vector<1x16xf32>
    %107 = vector.broadcast %106 : vector<1x16xf32> to vector<8x16xf32>
    %108 = arith.addf %105, %107 : vector<8x16xf32>
    %109 = vector.shape_cast %108 : vector<8x16xf32> to vector<1x8x16xf32>
    %c0_50 = arith.constant 0 : index
    %c0_51 = arith.constant 0 : index
    %c0_52 = arith.constant 0 : index
    %110 = vector.load %arg9[%c0_50, %c0_51, %c0_52] : memref<1x8x16xf32, #tpu.memory_space<vmem>>, vector<1x8x16xf32>
    tpu.vector_store %arg9[%c0_50, %c0_51, %c0_52], %109 {strides = array<i32>} : memref<1x8x16xf32, #tpu.memory_space<vmem>>, vector<1x8x16xf32>,
    return
  }
  func.func @transform_0(%arg0: i32) -> (i32, i32, i32) {
    %c0_i32 = arith.constant 0 : i32
    %c0_i32_0 = arith.constant 0 : i32
    %c0_i32_1 = arith.constant 0 : i32
    return %arg0, %c0_i32, %c0_i32_0 : i32, i32, i32
  }
  func.func @transform_1(%arg0: i32) -> (i32, i32, i32) {
    %c0_i32 = arith.constant 0 : i32
    %c0_i32_0 = arith.constant 0 : i32
    %c0_i32_1 = arith.constant 0 : i32
    return %arg0, %c0_i32, %c0_i32_0 : i32, i32, i32
  }
  func.func @transform_2(%arg0: i32) -> (i32, i32, i32) {
    %c0_i32 = arith.constant 0 : i32
    %c0_i32_0 = arith.constant 0 : i32
    %c0_i32_1 = arith.constant 0 : i32
    return %arg0, %c0_i32, %c0_i32_0 : i32, i32, i32
  }
  func.func @transform_3(%arg0: i32) -> (i32, i32) {
    %c0_i32 = arith.constant 0 : i32
    %c0_i32_0 = arith.constant 0 : i32
    %c0_i32_1 = arith.constant 0 : i32
    return %c0_i32, %c0_i32_0 : i32, i32
  }
  func.func @transform_4(%arg0: i32) -> (i32, i32) {
    %c0_i32 = arith.constant 0 : i32
    %c0_i32_0 = arith.constant 0 : i32
    %c0_i32_1 = arith.constant 0 : i32
    return %c0_i32, %c0_i32_0 : i32, i32
  }
  func.func @transform_5(%arg0: i32) -> (i32, i32) {
    %c0_i32 = arith.constant 0 : i32
    %c0_i32_0 = arith.constant 0 : i32
    %c0_i32_1 = arith.constant 0 : i32
    return %c0_i32, %c0_i32_0 : i32, i32
  }
  func.func @transform_6(%arg0: i32) -> (i32, i32) {
    %c0_i32 = arith.constant 0 : i32
    %c0_i32_0 = arith.constant 0 : i32
    %c0_i32_1 = arith.constant 0 : i32
    return %c0_i32, %c0_i32_0 : i32, i32
  }
  func.func @transform_7(%arg0: i32) -> (i32, i32) {
    %c0_i32 = arith.constant 0 : i32
    %c0_i32_0 = arith.constant 0 : i32
    %c0_i32_1 = arith.constant 0 : i32
    return %c0_i32, %c0_i32_0 : i32, i32
  }
  func.func @transform_8(%arg0: i32) -> (i32, i32, i32) {
    %c0_i32 = arith.constant 0 : i32
    %c0_i32_0 = arith.constant 0 : i32
    %c0_i32_1 = arith.constant 0 : i32
    return %arg0, %c0_i32, %c0_i32_0 : i32, i32, i32
  }
  func.func @transform_9(%arg0: i32) -> (i32, i32, i32, i32) {
    %c0_i32 = arith.constant 0 : i32
    %c0_i32_0 = arith.constant 0 : i32
    %c0_i32_1 = arith.constant 0 : i32
    %c0_i32_2 = arith.constant 0 : i32
    return %arg0, %c0_i32, %c0_i32_0, %c0_i32_1 : i32, i32, i32, i32
  }
}

</mosaic_0001>

<llo_original>
// kernel: tpu_custom_call.1
$region0: #{tpu_custom_call.1}
  #allocation0 [shape = 'u32[]', space=smem, size = 0x4, offset = 0x4, fixed_abs, tag = 'smem constant byte address 0x4 - core index']
  #allocation1 [shape = 'u32[144,128]{1,0:T(1,128)}', space=vmem, size = 0x12000, scoped, tag = 'internal scratch']
  %s0 = inlined_call_operand.hbm [shape: bf16[2,8,32], index: 0, kind: input, shape index: {}]
  %s1 = inlined_call_operand.vmem [shape: bf16[2,16,32], index: 1, kind: input, shape index: {}]
  %s2 = inlined_call_operand.hbm [shape: bf16[2,16,32], index: 2, kind: input, shape index: {}]
  %s3 = inlined_call_operand.vmem [shape: bf16[32,32], index: 3, kind: input, shape index: {}]
  %s4 = inlined_call_operand.hbm [shape: bf16[32,32], index: 4, kind: input, shape index: {}]
  %s5 = inlined_call_operand.hbm [shape: bf16[32,32], index: 5, kind: input, shape index: {}]
  %s6 = inlined_call_operand.vmem [shape: bf16[32,16], index: 6, kind: input, shape index: {}]
  %s7 = inlined_call_operand.vmem [shape: f32[1,16], index: 7, kind: input, shape index: {}]
  %s8 = inlined_call_operand.hbm [shape: f32[2,8,16], index: 8, kind: output, shape index: {0}]
  %s9 = inlined_call_operand.hbm [shape: bf16[2,4,8,16], index: 9, kind: output, shape index: {1}]
  %10 = xla_tuple %s8, %s9
  %s11 = sld [smem:[#allocation0]]
  $region89: #{tpu_custom_call.1} parent=0
    _
  %s13 = ssub.s32 1, %s11
  %s14 = scalar_select 0, %s13, %s11
  $region1: #{tpu_custom_call.1} parent=0
    #allocation2 [shape = 'u8[4096]{0}', space=vmem, size = 0x1000, scoped, tag = 'input window, operand 0']
    #allocation3 [shape = 's32[2]{0}', space=sflag, size = 0x8, scoped, tag = 'scoped memory for tpu_custom_call.1']
    #allocation4 [shape = 's32[2]{0}', space=sflag, size = 0x8, scoped, tag = 'scoped memory for tpu_custom_call.1']
    #allocation5 [shape = 'u8[8192]{0}', space=vmem, size = 0x2000, scoped, tag = 'input window, operand 2']
    #allocation6 [shape = 's32[2]{0}', space=sflag, size = 0x8, scoped, tag = 'scoped memory for tpu_custom_call.1']
    #allocation7 [shape = 'u8[8192]{0}', space=vmem, size = 0x2000, scoped, tag = 'input window, operand 4, single buffered']
    #allocation8 [shape = 'u8[8192]{0}', space=vmem, size = 0x2000, scoped, tag = 'input window, operand 5, single buffered']
    #allocation9 [shape = 's32[1]{0}', space=sflag, size = 0x4, scoped, tag = 'scoped memory for tpu_custom_call.1']
    #allocation10 [shape = 'u8[8192]{0}', space=vmem, size = 0x2000, scoped, tag = 'output window, operand 0']
    #allocation11 [shape = 'u8[16384]{0}', space=vmem, size = 0x4000, scoped, tag = 'output window, operand 1']
    #allocation12 [shape = 's32[2]{0}', space=sflag, size = 0x8, scoped, tag = 'scoped memory for tpu_custom_call.1']
    %15 = vsyncpa [#allocation3], 0
    %s16 = scalar_lea.sflag [#allocation3], 1
    %17 = vsyncpa %s16, 0
    %18 = vsyncpa [#allocation6], 0
    %s19 = scalar_lea.sflag [#allocation6], 1
    %20 = vsyncpa %s19, 0
    %21 = vsyncpa [#allocation9], 0
    %22 = vsyncpa [#allocation4], 0
    %s23 = scalar_lea.sflag [#allocation4], 1
    %24 = vsyncpa %s23, 0
    %25 = vsyncpa [#allocation12], 0
    %s26 = scalar_lea.sflag [#allocation12], 1
    %27 = vsyncpa %s26, 0
    loop: start=0, step=1, limit=4
    $region2: #{tpu_custom_call.1} parent=1 // loop_pre_header
      _
    $region3: #{tpu_custom_call.1} parent=1 // loop_header
      %s29 = sphi 0, %s33
      %p30 = scmp.ge.s32.totalorder %s29, 4
      %s39 = sphi 0, %s41
      %s42 = sphi 0, %s39
      %s43 = sphi 0, %s42
      %s59 = sphi 0, %s43
      %s65 = sphi 0, %s67
      %s68 = sphi 0, %s65
      %s69 = sphi 0, %s68
      %s85 = sphi 0, %s69
      %s91 = sphi 0, %s93
      %s94 = sphi 0, %s91
      %s95 = sphi 0, %s94
      %s111 = sphi 0, %s95
      %s115 = sphi 0, %s115
      %s117 = sphi 0, %s115
      %s118 = sphi 0, %s117
      %s132 = sphi 0, %s118
      %s136 = sphi 0, %s136
      %s138 = sphi 0, %s136
      %s139 = sphi 0, %s138
      %s153 = sphi 0, %s139
      %s157 = sphi 0, %s157
      %s159 = sphi 0, %s157
      %s160 = sphi 0, %s159
      %s174 = sphi 0, %s160
      %s178 = sphi 0, %s178
      %s180 = sphi 0, %s178
      %s181 = sphi 0, %s180
      %s195 = sphi 0, %s181
      %s199 = sphi 0, %s199
      %s201 = sphi 0, %s199
      %s202 = sphi 0, %s201
      %s216 = sphi 0, %s202
      %s222 = sphi 0, %s224
      %s225 = sphi 0, %s222
      %s226 = sphi 0, %s225
      %s242 = sphi 0, %s226
      %s248 = sphi 0, %s250
      %s251 = sphi 0, %s248
      %s252 = sphi 0, %s251
      %s268 = sphi 0, %s252
    $region4: #{tpu_custom_call.1} parent=1 // loop_header_branch
      %32 = sbr.rel (%p30) target = $region8
    $region5: #{tpu_custom_call.1} parent=1 // loop_body
      %s34 = ssub.s32 %s29, 1
      %s35 = ssub.s32 %s29, 2
      %s36 = sadd.s32 %s29, 1
      %s37 = ssub.s32 %s29, %s36
      %p38 = scmp.eq.s32.totalorder %s37, 0
      %s40 = sadd.s32 %s39, 1
      %s41 = scalar_select %p38, %s39, %s40
      %p44 = pneg %p38
      %p45 = scmp.eq.s32.totalorder %s29, 1
      %p46 = por %p44, %p45
      %p47 = scmp.ne.s32.totalorder %s39, %s42
      %p48 = scmp.eq.s32.totalorder %s29, 0
      %p49 = por %p47, %p48
      %p50 = scmp.ne.s32.totalorder %s39, %s42
      %p51 = scmp.eq.s32.totalorder %s34, 1
      %p52 = por %p50, %p51
      %p53 = scmp.ne.s32.totalorder %s42, %s43
      %p54 = scmp.eq.s32.totalorder %s34, 0
      %p55 = por %p53, %p54
      %p56 = scmp.ne.s32.totalorder %s42, %s43
      %p57 = scmp.eq.s32.totalorder %s35, 1
      %p58 = por %p56, %p57
      %p60 = scmp.ne.s32.totalorder %s43, %s59
      %p61 = scmp.eq.s32.totalorder %s35, 0
      %p62 = por %p60, %p61
      %s63 = ssub.s32 %s29, %s36
      %p64 = scmp.eq.s32.totalorder %s63, 0
      %s66 = sadd.s32 %s65, 1
      %s67 = scalar_select %p64, %s65, %s66
      %p70 = pneg %p64
      %p71 = scmp.eq.s32.totalorder %s29, 1
      %p72 = por %p70, %p71
      %p73 = scmp.ne.s32.totalorder %s65, %s68
      %p74 = scmp.eq.s32.totalorder %s29, 0
      %p75 = por %p73, %p74
      %p76 = scmp.ne.s32.totalorder %s65, %s68
      %p77 = scmp.eq.s32.totalorder %s34, 1
      %p78 = por %p76, %p77
      %p79 = scmp.ne.s32.totalorder %s68, %s69
      %p80 = scmp.eq.s32.totalorder %s34, 0
      %p81 = por %p79, %p80
      %p82 = scmp.ne.s32.totalorder %s68, %s69
      %p83 = scmp.eq.s32.totalorder %s35, 1
      %p84 = por %p82, %p83
      %p86 = scmp.ne.s32.totalorder %s69, %s85
      %p87 = scmp.eq.s32.totalorder %s35, 0
      %p88 = por %p86, %p87
      %s89 = ssub.s32 %s29, %s36
      %p90 = scmp.eq.s32.totalorder %s89, 0
      %s92 = sadd.s32 %s91, 1
      %s93 = scalar_select %p90, %s91, %s92
      %p96 = pneg %p90
      %p97 = scmp.eq.s32.totalorder %s29, 1
      %p98 = por %p96, %p97
      %p99 = scmp.ne.s32.totalorder %s91, %s94
      %p100 = scmp.eq.s32.totalorder %s29, 0
      %p101 = por %p99, %p100
      %p102 = scmp.ne.s32.totalorder %s91, %s94
      %p103 = scmp.eq.s32.totalorder %s34, 1
      %p104 = por %p102, %p103
      %p105 = scmp.ne.s32.totalorder %s94, %s95
      %p106 = scmp.eq.s32.totalorder %s34, 0
      %p107 = por %p105, %p106
      %p108 = scmp.ne.s32.totalorder %s94, %s95
      %p109 = scmp.eq.s32.totalorder %s35, 1
      %p110 = por %p108, %p109
      %p112 = scmp.ne.s32.totalorder %s95, %s111
      %p113 = scmp.eq.s32.totalorder %s35, 0
      %p114 = por %p112, %p113
      %s116 = sadd.s32 %s115, 1
      %p119 = scmp.eq.s32.totalorder %s29, 1
      %p120 = scmp.ne.s32.totalorder %s115, %s117
      %p121 = scmp.eq.s32.totalorder %s29, 0
      %p122 = por %p120, %p121
      %p123 = scmp.ne.s32.totalorder %s115, %s117
      %p124 = scmp.eq.s32.totalorder %s34, 1
      %p125 = por %p123, %p124
      %p126 = scmp.ne.s32.totalorder %s117, %s118
      %p127 = scmp.eq.s32.totalorder %s34, 0
      %p128 = por %p126, %p127
      %p129 = scmp.ne.s32.totalorder %s117, %s118
      %p130 = scmp.eq.s32.totalorder %s35, 1
      %p131 = por %p129, %p130
      %p133 = scmp.ne.s32.totalorder %s118, %s132
      %p134 = scmp.eq.s32.totalorder %s35, 0
      %p135 = por %p133, %p134
      %s137 = sadd.s32 %s136, 1
      %p140 = scmp.eq.s32.totalorder %s29, 1
      %p141 = scmp.ne.s32.totalorder %s136, %s138
      %p142 = scmp.eq.s32.totalorder %s29, 0
      %p143 = por %p141, %p142
      %p144 = scmp.ne.s32.totalorder %s136, %s138
      %p145 = scmp.eq.s32.totalorder %s34, 1
      %p146 = por %p144, %p145
      %p147 = scmp.ne.s32.totalorder %s138, %s139
      %p148 = scmp.eq.s32.totalorder %s34, 0
      %p149 = por %p147, %p148
      %p150 = scmp.ne.s32.totalorder %s138, %s139
      %p151 = scmp.eq.s32.totalorder %s35, 1
      %p152 = por %p150, %p151
      %p154 = scmp.ne.s32.totalorder %s139, %s153
      %p155 = scmp.eq.s32.totalorder %s35, 0
      %p156 = por %p154, %p155
      %s158 = sadd.s32 %s157, 1
      %p161 = scmp.eq.s32.totalorder %s29, 1
      %p162 = scmp.ne.s32.totalorder %s157, %s159
      %p163 = scmp.eq.s32.totalorder %s29, 0
      %p164 = por %p162, %p163
      %p165 = scmp.ne.s32.totalorder %s157, %s159
      %p166 = scmp.eq.s32.totalorder %s34, 1
      %p167 = por %p165, %p166
      %p168 = scmp.ne.s32.totalorder %s159, %s160
      %p169 = scmp.eq.s32.totalorder %s34, 0
      %p170 = por %p168, %p169
      %p171 = scmp.ne.s32.totalorder %s159, %s160
      %p172 = scmp.eq.s32.totalorder %s35, 1
      %p173 = por %p171, %p172
      %p175 = scmp.ne.s32.totalorder %s160, %s174
      %p176 = scmp.eq.s32.totalorder %s35, 0
      %p177 = por %p175, %p176
      %s179 = sadd.s32 %s178, 1
      %p182 = scmp.eq.s32.totalorder %s29, 1
      %p183 = scmp.ne.s32.totalorder %s178, %s180
      %p184 = scmp.eq.s32.totalorder %s29, 0
      %p185 = por %p183, %p184
      %p186 = scmp.ne.s32.totalorder %s178, %s180
      %p187 = scmp.eq.s32.totalorder %s34, 1
      %p188 = por %p186, %p187
      %p189 = scmp.ne.s32.totalorder %s180, %s181
      %p190 = scmp.eq.s32.totalorder %s34, 0
      %p191 = por %p189, %p190
      %p192 = scmp.ne.s32.totalorder %s180, %s181
      %p193 = scmp.eq.s32.totalorder %s35, 1
      %p194 = por %p192, %p193
      %p196 = scmp.ne.s32.totalorder %s181, %s195
      %p197 = scmp.eq.s32.totalorder %s35, 0
      %p198 = por %p196, %p197
      %s200 = sadd.s32 %s199, 1
      %p203 = scmp.eq.s32.totalorder %s29, 1
      %p204 = scmp.ne.s32.totalorder %s199, %s201
      %p205 = scmp.eq.s32.totalorder %s29, 0
      %p206 = por %p204, %p205
      %p207 = scmp.ne.s32.totalorder %s199, %s201
      %p208 = scmp.eq.s32.totalorder %s34, 1
      %p209 = por %p207, %p208
      %p210 = scmp.ne.s32.totalorder %s201, %s202
      %p211 = scmp.eq.s32.totalorder %s34, 0
      %p212 = por %p210, %p211
      %p213 = scmp.ne.s32.totalorder %s201, %s202
      %p214 = scmp.eq.s32.totalorder %s35, 1
      %p215 = por %p213, %p214
      %p217 = scmp.ne.s32.totalorder %s202, %s216
      %p218 = scmp.eq.s32.totalorder %s35, 0
      %p219 = por %p217, %p218
      %s220 = ssub.s32 %s29, %s36
      %p221 = scmp.eq.s32.totalorder %s220, 0
      %s223 = sadd.s32 %s222, 1
      %s224 = scalar_select %p221, %s222, %s223
      %p227 = pneg %p221
      %p228 = scmp.eq.s32.totalorder %s29, 1
      %p229 = por %p227, %p228
      %p230 = scmp.ne.s32.totalorder %s222, %s225
      %p231 = scmp.eq.s32.totalorder %s29, 0
      %p232 = por %p230, %p231
      %p233 = scmp.ne.s32.totalorder %s222, %s225
      %p234 = scmp.eq.s32.totalorder %s34, 1
      %p235 = por %p233, %p234
      %p236 = scmp.ne.s32.totalorder %s225, %s226
      %p237 = scmp.eq.s32.totalorder %s34, 0
      %p238 = por %p236, %p237
      %p239 = scmp.ne.s32.totalorder %s225, %s226
      %p240 = scmp.eq.s32.totalorder %s35, 1
      %p241 = por %p239, %p240
      %p243 = scmp.ne.s32.totalorder %s226, %s242
      %p244 = scmp.eq.s32.totalorder %s35, 0
      %p245 = por %p243, %p244
      %s246 = ssub.s32 %s29, %s36
      %p247 = scmp.eq.s32.totalorder %s246, 0
      %s249 = sadd.s32 %s248, 1
      %s250 = scalar_select %p247, %s248, %s249
      %p253 = pneg %p247
      %p254 = scmp.eq.s32.totalorder %s29, 1
      %p255 = por %p253, %p254
      %p256 = scmp.ne.s32.totalorder %s248, %s251
      %p257 = scmp.eq.s32.totalorder %s29, 0
      %p258 = por %p256, %p257
      %p259 = scmp.ne.s32.totalorder %s248, %s251
      %p260 = scmp.eq.s32.totalorder %s34, 1
      %p261 = por %p259, %p260
      %p262 = scmp.ne.s32.totalorder %s251, %s252
      %p263 = scmp.eq.s32.totalorder %s34, 0
      %p264 = por %p262, %p263
      %p265 = scmp.ne.s32.totalorder %s251, %s252
      %p266 = scmp.eq.s32.totalorder %s35, 1
      %p267 = por %p265, %p266
      %p269 = scmp.ne.s32.totalorder %s252, %s268
      %p270 = scmp.eq.s32.totalorder %s35, 0
      %p271 = por %p269, %p270
      %p272 = scmp.le.s32.totalorder 1, %s29
      %p273 = scmp.lt.s32.totalorder %s29, 3
      %p274 = pnand %p272, %p273
      %p275 = pneg %p274
      // Predicated region
      $region9: #{tpu_custom_call.1} parent=5 // pred_check
        _
      $region10: #{tpu_custom_call.1} parent=5 // pred_check_branch
        %277 = sbr.rel (%p274) target = $region12
      $region11: #{tpu_custom_call.1} parent=5 // pred_region
        %s278 = ssub.s32 %s29, 1
        // Predicated region
        $region13: #{tpu_custom_call.1} parent=11 // pred_check
          %p279 = pneg %p128
        $region14: #{tpu_custom_call.1} parent=11 // pred_check_branch
          %281 = sbr.rel (%p279) target = $region16
        $region15: #{tpu_custom_call.1} parent=11 // pred_region
          _
        $region16: #{tpu_custom_call.1} parent=11 // pred_fallthru
          _
        // Predicated region
        $region17: #{tpu_custom_call.1} parent=11 // pred_check
          %p282 = pneg %p149
        $region18: #{tpu_custom_call.1} parent=11 // pred_check_branch
          %284 = sbr.rel (%p282) target = $region20
        $region19: #{tpu_custom_call.1} parent=11 // pred_region
          %s286 = ssub.s32 256, 256
          %287 = vsyncadd [#allocation6], %s286
          %s288 = sshll.u32 [#allocation7], 4
          %s289 = int_to_ptr.vmem [resolvable:$true] %s288
          %294 = dma.hbm_to_vmem [thread:$0]  %s4, 256, %s289, [#allocation6], 64, 64, 4
        $region20: #{tpu_custom_call.1} parent=11 // pred_fallthru
          _
        // Predicated region
        $region21: #{tpu_custom_call.1} parent=11 // pred_check
          %p295 = pneg %p170
        $region22: #{tpu_custom_call.1} parent=11 // pred_check_branch
          %297 = sbr.rel (%p295) target = $region24
        $region23: #{tpu_custom_call.1} parent=11 // pred_region
          %s299 = ssub.s32 256, 256
          %300 = vsyncadd [#allocation9], %s299
          %s301 = sshll.u32 [#allocation8], 4
          %s302 = int_to_ptr.vmem [resolvable:$true] %s301
          %307 = dma.hbm_to_vmem [thread:$0]  %s5, 256, %s302, [#allocation9], 64, 64, 4
        $region24: #{tpu_custom_call.1} parent=11 // pred_fallthru
          _
        // Predicated region
        $region25: #{tpu_custom_call.1} parent=11 // pred_check
          %p308 = pneg %p191
        $region26: #{tpu_custom_call.1} parent=11 // pred_check_branch
          %310 = sbr.rel (%p308) target = $region28
        $region27: #{tpu_custom_call.1} parent=11 // pred_region
          _
        $region28: #{tpu_custom_call.1} parent=11 // pred_fallthru
          _
        // Predicated region
        $region29: #{tpu_custom_call.1} parent=11 // pred_check
          %p311 = pneg %p212
        $region30: #{tpu_custom_call.1} parent=11 // pred_check_branch
          %313 = sbr.rel (%p311) target = $region32
        $region31: #{tpu_custom_call.1} parent=11 // pred_region
          _
        $region32: #{tpu_custom_call.1} parent=11 // pred_fallthru
          _
      $region12: #{tpu_custom_call.1} parent=5 // pred_fallthru
        _
      %p314 = scmp.lt.s32.totalorder %s29, 2
      // Predicated region
      $region33: #{tpu_custom_call.1} parent=5 // pred_check
        %p315 = pneg %p314
      $region34: #{tpu_custom_call.1} parent=5 // pred_check_branch
        %317 = sbr.rel (%p315) target = $region36
      $region35: #{tpu_custom_call.1} parent=5 // pred_region
        // Predicated region
        $region37: #{tpu_custom_call.1} parent=35 // pred_check
          %p318 = pneg %p49
        $region38: #{tpu_custom_call.1} parent=35 // pred_check_branch
          %320 = sbr.rel (%p318) target = $region40
        $region39: #{tpu_custom_call.1} parent=35 // pred_region
          %s321 = sand.u32 %s39, 1
          %s322 = scalar_lea.sflag [#allocation3], %s321
          %s323 = sand.u32 %s39, 1
          %s324 = smul.addr %s323, 4
          %s325 = scalar_lea.vmem [#allocation2], %s324
          %s327 = ssub.s32 64, 64
          %328 = vsyncadd %s322, %s327
          %s329 = smul.addr %s29, 64
          %s330 = scalar_lea.hbm %s0, %s329
          %s332 = sshll.u32 %s325, 4
          %s333 = int_to_ptr.vmem [resolvable:$true] %s332
          %335 = dma.hbm_to_vmem [thread:$0]  %s330, 64, %s333, %s322
        $region40: #{tpu_custom_call.1} parent=35 // pred_fallthru
          _
        // Predicated region
        $region41: #{tpu_custom_call.1} parent=35 // pred_check
          %p336 = pneg %p75
        $region42: #{tpu_custom_call.1} parent=35 // pred_check_branch
          %338 = sbr.rel (%p336) target = $region44
        $region43: #{tpu_custom_call.1} parent=35 // pred_region
          %p339 = scmp.lt.s32.totalorder %s29, 1
          %s340 = scalar_select %p339, %s29, 1
          %s341 = smul.addr %s340, 2
          %s342 = smul.addr %s341, 4
          %s343 = scalar_lea.vmem %s1, %s342
        $region44: #{tpu_custom_call.1} parent=35 // pred_fallthru
          _
        // Predicated region
        $region45: #{tpu_custom_call.1} parent=35 // pred_check
          %p344 = pneg %p101
        $region46: #{tpu_custom_call.1} parent=35 // pred_check_branch
          %346 = sbr.rel (%p344) target = $region48
        $region47: #{tpu_custom_call.1} parent=35 // pred_region
          %s347 = sand.u32 %s29, 1
          %s348 = scalar_lea.sflag [#allocation6], %s347
          %s349 = sand.u32 %s91, 1
          %s350 = smul.addr %s349, 8
          %s351 = scalar_lea.vmem [#allocation5], %s350
          %s353 = ssub.s32 128, 128
          %354 = vsyncadd %s348, %s353
          %s355 = smul.addr %s29, 2
          %s356 = smul.addr %s355, 64
          %s357 = scalar_lea.hbm %s2, %s356
          %s358 = sshll.u32 %s351, 4
          %s359 = int_to_ptr.vmem [resolvable:$true] %s358
          %364 = dma.hbm_to_vmem [thread:$0]  %s357, 128, %s359, %s348, 64, 64, 4
        $region48: #{tpu_custom_call.1} parent=35 // pred_fallthru
          _
      $region36: #{tpu_custom_call.1} parent=5 // pred_fallthru
        _
      %p365 = scmp.le.s32.totalorder 1, %s29
      %p366 = scmp.lt.s32.totalorder %s29, 3
      %p367 = pnand %p365, %p366
      %p368 = pneg %p367
      // Predicated region
      $region49: #{tpu_custom_call.1} parent=5 // pred_check
        _
      $region50: #{tpu_custom_call.1} parent=5 // pred_check_branch
        %370 = sbr.rel (%p367) target = $region52
      $region51: #{tpu_custom_call.1} parent=5 // pred_region
        %s371 = ssub.s32 %s29, 1
        %s372 = sand.u32 %s42, 1
        %s373 = scalar_lea.sflag [#allocation3], %s372
        %s374 = sand.u32 %s42, 1
        %s375 = smul.addr %s374, 4
        %s376 = scalar_lea.vmem [#allocation2], %s375
        // Predicated region
        $region53: #{tpu_custom_call.1} parent=51 // pred_check
          %p377 = pneg %p55
        $region54: #{tpu_custom_call.1} parent=51 // pred_check_branch
          %379 = sbr.rel (%p377) target = $region56
        $region55: #{tpu_custom_call.1} parent=51 // pred_region
          %380 = dma.done %s373, 64
        $region56: #{tpu_custom_call.1} parent=51 // pred_fallthru
          _
        %s381 = sand.u32 %s34, 1
        %s382 = scalar_lea.sflag [#allocation6], %s381
        %s383 = sand.u32 %s94, 1
        %s384 = smul.addr %s383, 8
        %s385 = scalar_lea.vmem [#allocation5], %s384
        // Predicated region
        $region57: #{tpu_custom_call.1} parent=51 // pred_check
          %p386 = pneg %p107
        $region58: #{tpu_custom_call.1} parent=51 // pred_check_branch
          %388 = sbr.rel (%p386) target = $region60
        $region59: #{tpu_custom_call.1} parent=51 // pred_region
          %389 = dma.done %s382, 128
        $region60: #{tpu_custom_call.1} parent=51 // pred_fallthru
          _
        // Predicated region
        $region61: #{tpu_custom_call.1} parent=51 // pred_check
          %p390 = pneg %p149
        $region62: #{tpu_custom_call.1} parent=51 // pred_check_branch
          %392 = sbr.rel (%p390) target = $region64
        $region63: #{tpu_custom_call.1} parent=51 // pred_region
          %393 = dma.done [#allocation6], 256
        $region64: #{tpu_custom_call.1} parent=51 // pred_fallthru
          _
        // Predicated region
        $region65: #{tpu_custom_call.1} parent=51 // pred_check
          %p394 = pneg %p170
        $region66: #{tpu_custom_call.1} parent=51 // pred_check_branch
          %396 = sbr.rel (%p394) target = $region68
        $region67: #{tpu_custom_call.1} parent=51 // pred_region
          %397 = dma.done [#allocation9], 256
        $region68: #{tpu_custom_call.1} parent=51 // pred_fallthru
          _
        %s398 = sand.u32 %s42, 1
        %s399 = scalar_lea.sflag [#allocation3], %s398
        %s400 = sand.u32 %s42, 1
        %s401 = smul.addr %s400, 4
        %s402 = scalar_lea.vmem [#allocation2], %s401
        %p403 = pneg %p55
        %p404 = pneg %p52
        %p405 = scmp.lt.s32.totalorder %s34, 1
        %s406 = scalar_select %p405, %s34, 1
        %s407 = smul.addr %s406, 2
        %s408 = smul.addr %s407, 4
        %s409 = scalar_lea.vmem %s1, %s408
        %p410 = pneg %p81
        %p411 = pneg %p78
        %s412 = sand.u32 %s34, 1
        %s413 = scalar_lea.sflag [#allocation6], %s412
        %s414 = sand.u32 %s94, 1
        %s415 = smul.addr %s414, 8
        %s416 = scalar_lea.vmem [#allocation5], %s415
        %p417 = pneg %p107
        %p418 = pneg %p104
        %p419 = pneg %p128
        %p420 = pneg %p125
        %p421 = pneg %p149
        %p422 = pneg %p146
        %p423 = pneg %p170
        %p424 = pneg %p167
        %p425 = pneg %p191
        %p426 = pneg %p188
        %p427 = pneg %p212
        %p428 = pneg %p209
        %p429 = pneg %p238
        %p430 = pneg %p235
        %s431 = sand.u32 %s225, 1
        %s432 = scalar_lea.sflag [#allocation4], %s431
        %s433 = sand.u32 %s225, 1
        %s434 = smul.addr %s433, 8
        %s435 = scalar_lea.vmem [#allocation10], %s434
        %p436 = pneg %p264
        %p437 = pneg %p261
        %s438 = sand.u32 %s251, 1
        %s439 = scalar_lea.sflag [#allocation12], %s438
        %s440 = sand.u32 %s251, 1
        %s441 = smul.addr %s440, 16
        %s442 = scalar_lea.vmem [#allocation11], %s441
        %p443 = scmp.lt.s32.totalorder %s34, 1
        %s444 = scalar_select %p443, %s34, 1
        %s445 = smul.addr %s444, 2
        %s446 = smul.addr %s445, 4
        %s447 = scalar_lea.vmem %s1, %s446
        %v449 = vld [vmem:[%s376] sm:$0xf]
        %v450 = vld [vmem:[%s447] sm:$0xf]
        %v451 = vld [vmem:[%s447 + $0x4] sm:$0xf]
        %v452 = vld [vmem:[%s385] sm:$0xf]
        %v453 = vld [vmem:[%s385 + $0x4] sm:$0xf]
        %v454 = vld [vmem:[%s3] sm:$0xf]
        %v455 = vld [vmem:[%s3 + $0x4] sm:$0xf]
        %v456 = vld [vmem:[%s3 + $0x8] sm:$0xf]
        %v457 = vld [vmem:[%s3 + $0xc] sm:$0xf]
        %v462 = vunpack.c.l.b16 %v454
        %v463 = vunpack.c.l.b16 %v455
        %v464 = vunpack.c.l.b16 %v456
        %v465 = vunpack.c.l.b16 %v457
        %v466 = vpack.c.b16 %v463, %v462
        %v467 = vpack.c.b16 %v465, %v464
        %vm470 = vcmask 261120
        %v472 = vsel %vm470, %v449, 0
        %474 = vmatprep.subr.bf16.mxu0 0
        %475 = vmatpush1.bf16.msra.mxu0 %v466
        %476 = vmatprep.subr.bf16.mxu0 0
        %477 = vmatpush1.bf16.msra.mxu0 %v467
        %478 = vmatprep.subr.bf16.mxu0 0
        %479 = vmatpush1.bf16.msra.mxu0 0
        %480 = vmatprep.subr.bf16.mxu0 0
        %481 = vmatpush1.bf16.msra.mxu0 0
        %482 = vmatprep.subr.bf16.mxu0 0
        %483 = vmatpush1.bf16.msra.mxu0 0
        %484 = vmatprep.subr.bf16.mxu0 0
        %485 = vmatpush1.bf16.msra.mxu0 0
        %486 = vmatprep.subr.bf16.mxu0 0
        %487 = vmatpush1.bf16.msra.mxu0 0
        %488 = vmatprep.subr.bf16.mxu0 0
        %489 = vmatpush1.bf16.msra.mxu0 0
        %490 = vmatprep.subr.bf16.mxu0 0
        %491 = vmatpush1.bf16.msra.mxu0 0
        %492 = vmatprep.subr.bf16.mxu0 0
        %493 = vmatpush1.bf16.msra.mxu0 0
        %494 = vmatprep.subr.bf16.mxu0 0
        %495 = vmatpush1.bf16.msra.mxu0 0
        %496 = vmatprep.subr.bf16.mxu0 0
        %497 = vmatpush1.bf16.msra.mxu0 0
        %498 = vmatprep.subr.bf16.mxu0 0
        %499 = vmatpush1.bf16.msra.mxu0 0
        %500 = vmatprep.subr.bf16.mxu0 0
        %501 = vmatpush1.bf16.msra.mxu0 0
        %502 = vmatprep.subr.bf16.mxu0 0
        %503 = vmatpush1.bf16.msra.mxu0 0
        %504 = vmatprep.subr.bf16.mxu0 0
        %505 = vmatpush1.bf16.msra.mxu0 0
        %506 = vmatprep.mubr.bf16.mxu0 0
        %507 = vmatmul.mubr.bf16.gmra.mrb[0].mxu0 %v472
        %v508 = vpop.f32.mrb[0].mxu0
        %v509 = vadd.f32 0.0, %v508
        %v510 = vpop.f32.mrb[0].mxu0
        %v511 = vpop.f32.mrb[0].mxu0
        %v512 = vpop.f32.mrb[0].mxu0
        %513 = vdwg.mxu0
        %v514 = vld [vmem:[#allocation7] sm:$0xf]
        %v515 = vld [vmem:[#allocation7 + $0x4] sm:$0xf]
        %v516 = vld [vmem:[#allocation7 + $0x8] sm:$0xf]
        %v517 = vld [vmem:[#allocation7 + $0xc] sm:$0xf]
        %v520 = vunpack.c.l.b16 %v450
        %v521 = vunpack.c.l.b16 %v451
        %v522 = vpack.c.b16 %v521, %v520
        %v527 = vunpack.c.l.b16 %v514
        %v528 = vunpack.c.l.b16 %v515
        %v529 = vunpack.c.l.b16 %v516
        %v530 = vunpack.c.l.b16 %v517
        %v531 = vpack.c.b16 %v528, %v527
        %v532 = vpack.c.b16 %v530, %v529
        %v536 = vsel %vm470, %v522, 0
        %538 = vmatprep.subr.bf16.mxu0 0
        %539 = vmatpush1.bf16.msra.mxu0 %v531
        %540 = vmatprep.subr.bf16.mxu0 0
        %541 = vmatpush1.bf16.msra.mxu0 %v532
        %542 = vmatprep.subr.bf16.mxu0 0
        %543 = vmatpush1.bf16.msra.mxu0 0
        %544 = vmatprep.subr.bf16.mxu0 0
        %545 = vmatpush1.bf16.msra.mxu0 0
        %546 = vmatprep.subr.bf16.mxu0 0
        %547 = vmatpush1.bf16.msra.mxu0 0
        %548 = vmatprep.subr.bf16.mxu0 0
        %549 = vmatpush1.bf16.msra.mxu0 0
        %550 = vmatprep.subr.bf16.mxu0 0
        %551 = vmatpush1.bf16.msra.mxu0 0
        %552 = vmatprep.subr.bf16.mxu0 0
        %553 = vmatpush1.bf16.msra.mxu0 0
        %554 = vmatprep.subr.bf16.mxu0 0
        %555 = vmatpush1.bf16.msra.mxu0 0
        %556 = vmatprep.subr.bf16.mxu0 0
        %557 = vmatpush1.bf16.msra.mxu0 0
        %558 = vmatprep.subr.bf16.mxu0 0
        %559 = vmatpush1.bf16.msra.mxu0 0
        %560 = vmatprep.subr.bf16.mxu0 0
        %561 = vmatpush1.bf16.msra.mxu0 0
        %562 = vmatprep.subr.bf16.mxu0 0
        %563 = vmatpush1.bf16.msra.mxu0 0
        %564 = vmatprep.subr.bf16.mxu0 0
        %565 = vmatpush1.bf16.msra.mxu0 0
        %566 = vmatprep.subr.bf16.mxu0 0
        %567 = vmatpush1.bf16.msra.mxu0 0
        %568 = vmatprep.subr.bf16.mxu0 0
        %569 = vmatpush1.bf16.msra.mxu0 0
        %570 = vmatprep.mubr.bf16.mxu0 0
        %571 = vmatmul.mubr.bf16.gmra.mrb[0].mxu0 %v536
        %v572 = vpop.f32.mrb[0].mxu0
        %v573 = vadd.f32 0.0, %v572
        %v574 = vpop.f32.mrb[0].mxu0
        %v575 = vpop.f32.mrb[0].mxu0
        %v576 = vadd.f32 0.0, %v575
        %v577 = vpop.f32.mrb[0].mxu0
        %578 = vdwg.mxu0
        %v579 = vld [vmem:[#allocation8] sm:$0xf]
        %v580 = vld [vmem:[#allocation8 + $0x4] sm:$0xf]
        %v581 = vld [vmem:[#allocation8 + $0x8] sm:$0xf]
        %v582 = vld [vmem:[#allocation8 + $0xc] sm:$0xf]
        %v585 = vunpack.c.l.b16 %v452
        %v586 = vunpack.c.l.b16 %v453
        %v587 = vpack.c.b16 %v586, %v585
        %v592 = vunpack.c.l.b16 %v579
        %v593 = vunpack.c.l.b16 %v580
        %v594 = vunpack.c.l.b16 %v581
        %v595 = vunpack.c.l.b16 %v582
        %v596 = vpack.c.b16 %v593, %v592
        %v597 = vpack.c.b16 %v595, %v594
        %v601 = vsel %vm470, %v587, 0
        %603 = vmatprep.subr.bf16.mxu0 0
        %604 = vmatpush1.bf16.msra.mxu0 %v596
        %605 = vmatprep.subr.bf16.mxu0 0
        %606 = vmatpush1.bf16.msra.mxu0 %v597
        %607 = vmatprep.subr.bf16.mxu0 0
        %608 = vmatpush1.bf16.msra.mxu0 0
        %609 = vmatprep.subr.bf16.mxu0 0
        %610 = vmatpush1.bf16.msra.mxu0 0
        %611 = vmatprep.subr.bf16.mxu0 0
        %612 = vmatpush1.bf16.msra.mxu0 0
        %613 = vmatprep.subr.bf16.mxu0 0
        %614 = vmatpush1.bf16.msra.mxu0 0
        %615 = vmatprep.subr.bf16.mxu0 0
        %616 = vmatpush1.bf16.msra.mxu0 0
        %617 = vmatprep.subr.bf16.mxu0 0
        %618 = vmatpush1.bf16.msra.mxu0 0
        %619 = vmatprep.subr.bf16.mxu0 0
        %620 = vmatpush1.bf16.msra.mxu0 0
        %621 = vmatprep.subr.bf16.mxu0 0
        %622 = vmatpush1.bf16.msra.mxu0 0
        %623 = vmatprep.subr.bf16.mxu0 0
        %624 = vmatpush1.bf16.msra.mxu0 0
        %625 = vmatprep.subr.bf16.mxu0 0
        %626 = vmatpush1.bf16.msra.mxu0 0
        %627 = vmatprep.subr.bf16.mxu0 0
        %628 = vmatpush1.bf16.msra.mxu0 0
        %629 = vmatprep.subr.bf16.mxu0 0
        %630 = vmatpush1.bf16.msra.mxu0 0
        %631 = vmatprep.subr.bf16.mxu0 0
        %632 = vmatpush1.bf16.msra.mxu0 0
        %633 = vmatprep.subr.bf16.mxu0 0
        %634 = vmatpush1.bf16.msra.mxu0 0
        %635 = vmatprep.mubr.bf16.mxu0 0
        %636 = vmatmul.mubr.bf16.gmra.mrb[0].mxu0 %v601
        %v637 = vpop.f32.mrb[0].mxu0
        %v638 = vadd.f32 0.0, %v637
        %v639 = vpop.f32.mrb[0].mxu0
        %v640 = vpop.f32.mrb[0].mxu0
        %v641 = vadd.f32 0.0, %v640
        %v642 = vpop.f32.mrb[0].mxu0
        %643 = vdwg.mxu0
        %v644 = vpack.c.bf16 %v509, %v509
        %v645 = vpack.c.bf16 %v576, %v573
        %v646 = vpack.c.bf16 %v641, %v638
        %vm647 = vcmask 64512
        %v649 = vsel %vm647, %v644, 0
        %v652 = vsel %vm647, %v645, 0
        %654 = vmatprep.subr.bf16.mxu0 0
        %655 = vmatpush1.bf16.xpose.msra.mxu0 %v652
        %656 = vmatprep.subr.bf16.mxu0 0
        %657 = vmatpush1.bf16.xpose.msra.mxu0 0
        %658 = vmatprep.subr.bf16.mxu0 0
        %659 = vmatpush1.bf16.xpose.msra.mxu0 0
        %660 = vmatprep.subr.bf16.mxu0 0
        %661 = vmatpush1.bf16.xpose.msra.mxu0 0
        %662 = vmatprep.subr.bf16.mxu0 0
        %663 = vmatpush1.bf16.xpose.msra.mxu0 0
        %664 = vmatprep.subr.bf16.mxu0 0
        %665 = vmatpush1.bf16.xpose.msra.mxu0 0
        %666 = vmatprep.subr.bf16.mxu0 0
        %667 = vmatpush1.bf16.xpose.msra.mxu0 0
        %668 = vmatprep.subr.bf16.mxu0 0
        %669 = vmatpush1.bf16.xpose.msra.mxu0 0
        %670 = vmatprep.subr.bf16.mxu0 0
        %671 = vmatpush1.bf16.xpose.msra.mxu0 0
        %672 = vmatprep.subr.bf16.mxu0 0
        %673 = vmatpush1.bf16.xpose.msra.mxu0 0
        %674 = vmatprep.subr.bf16.mxu0 0
        %675 = vmatpush1.bf16.xpose.msra.mxu0 0
        %676 = vmatprep.subr.bf16.mxu0 0
        %677 = vmatpush1.bf16.xpose.msra.mxu0 0
        %678 = vmatprep.subr.bf16.mxu0 0
        %679 = vmatpush1.bf16.xpose.msra.mxu0 0
        %680 = vmatprep.subr.bf16.mxu0 0
        %681 = vmatpush1.bf16.xpose.msra.mxu0 0
        %682 = vmatprep.subr.bf16.mxu0 0
        %683 = vmatpush1.bf16.xpose.msra.mxu0 0
        %684 = vmatprep.subr.bf16.mxu0 0
        %685 = vmatpush1.bf16.xpose.msra.mxu0 0
        %686 = vmatprep.mubr.bf16.mxu0 0
        %687 = vmatmul.mubr.bf16.gmra.mrb[0].mxu0 %v649
        %v688 = vpop.f32.mrb[0].mxu0
        %v689 = vadd.f32 0.0, %v688
        %v690 = vpop.f32.mrb[0].mxu0
        %v691 = vpop.f32.mrb[0].mxu0
        %v692 = vpop.f32.mrb[0].mxu0
        %693 = vdwg.mxu0
        %vm694 = vcmask 130048
        %v695 = vsel %vm694, %v689, -inf
        %696 = vmax.xlane.f32.xlu0 %v695
        %v697 = vpop.xlane.xlu0 %696
        %v698 = vsub.f32 %v689, %v697
        %v699 = vmul.f32 %v698, 1.442695
        %v700 = vpow.pop %v699
        %v701 = vsel %vm694, %v700, 0.0
        %702 = vadd.xlane.f32.xlu0 %v701
        %v703 = vpop.xlane.xlu0 %702
        %v704 = vrcp.pop %v703
        %v705 = vmul.f32 %v700, %v704
        %v706 = vpack.c.bf16 %v705, %v705
        %vm707 = vcmask 125952
        %708 = vst.msk [vmem:[%s442] sm:$0xf] %vm707, %v706
        %v710 = vsel %vm694, %v706, 0
        %712 = vmatprep.subr.bf16.mxu0 0
        %713 = vmatpush1.bf16.msra.mxu0 %v646
        %714 = vmatprep.subr.bf16.mxu0 0
        %715 = vmatpush1.bf16.msra.mxu0 0
        %716 = vmatprep.subr.bf16.mxu0 0
        %717 = vmatpush1.bf16.msra.mxu0 0
        %718 = vmatprep.subr.bf16.mxu0 0
        %719 = vmatpush1.bf16.msra.mxu0 0
        %720 = vmatprep.subr.bf16.mxu0 0
        %721 = vmatpush1.bf16.msra.mxu0 0
        %722 = vmatprep.subr.bf16.mxu0 0
        %723 = vmatpush1.bf16.msra.mxu0 0
        %724 = vmatprep.subr.bf16.mxu0 0
        %725 = vmatpush1.bf16.msra.mxu0 0
        %726 = vmatprep.subr.bf16.mxu0 0
        %727 = vmatpush1.bf16.msra.mxu0 0
        %728 = vmatprep.subr.bf16.mxu0 0
        %729 = vmatpush1.bf16.msra.mxu0 0
        %730 = vmatprep.subr.bf16.mxu0 0
        %731 = vmatpush1.bf16.msra.mxu0 0
        %732 = vmatprep.subr.bf16.mxu0 0
        %733 = vmatpush1.bf16.msra.mxu0 0
        %734 = vmatprep.subr.bf16.mxu0 0
        %735 = vmatpush1.bf16.msra.mxu0 0
        %736 = vmatprep.subr.bf16.mxu0 0
        %737 = vmatpush1.bf16.msra.mxu0 0
        %738 = vmatprep.subr.bf16.mxu0 0
        %739 = vmatpush1.bf16.msra.mxu0 0
        %740 = vmatprep.subr.bf16.mxu0 0
        %741 = vmatpush1.bf16.msra.mxu0 0
        %742 = vmatprep.subr.bf16.mxu0 0
        %743 = vmatpush1.bf16.msra.mxu0 0
        %744 = vmatprep.mubr.bf16.mxu0 0
        %745 = vmatmul.mubr.bf16.gmra.mrb[0].mxu0 %v710
        %v746 = vpop.f32.mrb[0].mxu0
        %v747 = vadd.f32 0.0, %v746
        %v748 = vpop.f32.mrb[0].mxu0
        %v749 = vpop.f32.mrb[0].mxu0
        %v750 = vpop.f32.mrb[0].mxu0
        %751 = vdwg.mxu0
        %v752 = vpack.c.bf16 %v747, %v747
        %754 = vrot.lane.b32.xlu0 %v644, 120
        %v755 = vpop.permute.xlu0 %754
        %757 = vrot.lane.b32.xlu0 %v645, 120
        %v758 = vpop.permute.xlu0 %757
        %v760 = vsel %vm647, %v755, 0
        %v763 = vsel %vm647, %v758, 0
        %765 = vmatprep.subr.bf16.mxu0 0
        %766 = vmatpush1.bf16.xpose.msra.mxu0 %v763
        %767 = vmatprep.subr.bf16.mxu0 0
        %768 = vmatpush1.bf16.xpose.msra.mxu0 0
        %769 = vmatprep.subr.bf16.mxu0 0
        %770 = vmatpush1.bf16.xpose.msra.mxu0 0
        %771 = vmatprep.subr.bf16.mxu0 0
        %772 = vmatpush1.bf16.xpose.msra.mxu0 0
        %773 = vmatprep.subr.bf16.mxu0 0
        %774 = vmatpush1.bf16.xpose.msra.mxu0 0
        %775 = vmatprep.subr.bf16.mxu0 0
        %776 = vmatpush1.bf16.xpose.msra.mxu0 0
        %777 = vmatprep.subr.bf16.mxu0 0
        %778 = vmatpush1.bf16.xpose.msra.mxu0 0
        %779 = vmatprep.subr.bf16.mxu0 0
        %780 = vmatpush1.bf16.xpose.msra.mxu0 0
        %781 = vmatprep.subr.bf16.mxu0 0
        %782 = vmatpush1.bf16.xpose.msra.mxu0 0
        %783 = vmatprep.subr.bf16.mxu0 0
        %784 = vmatpush1.bf16.xpose.msra.mxu0 0
        %785 = vmatprep.subr.bf16.mxu0 0
        %786 = vmatpush1.bf16.xpose.msra.mxu0 0
        %787 = vmatprep.subr.bf16.mxu0 0
        %788 = vmatpush1.bf16.xpose.msra.mxu0 0
        %789 = vmatprep.subr.bf16.mxu0 0
        %790 = vmatpush1.bf16.xpose.msra.mxu0 0
        %791 = vmatprep.subr.bf16.mxu0 0
        %792 = vmatpush1.bf16.xpose.msra.mxu0 0
        %793 = vmatprep.subr.bf16.mxu0 0
        %794 = vmatpush1.bf16.xpose.msra.mxu0 0
        %795 = vmatprep.subr.bf16.mxu0 0
        %796 = vmatpush1.bf16.xpose.msra.mxu0 0
        %797 = vmatprep.mubr.bf16.mxu0 0
        %798 = vmatmul.mubr.bf16.gmra.mrb[0].mxu0 %v760
        %v799 = vpop.f32.mrb[0].mxu0
        %v800 = vadd.f32 0.0, %v799
        %v801 = vpop.f32.mrb[0].mxu0
        %v802 = vpop.f32.mrb[0].mxu0
        %v803 = vpop.f32.mrb[0].mxu0
        %804 = vdwg.mxu0
        %v805 = vsel %vm694, %v800, -inf
        %806 = vmax.xlane.f32.xlu0 %v805
        %v807 = vpop.xlane.xlu0 %806
        %v808 = vsub.f32 %v800, %v807
        %v809 = vmul.f32 %v808, 1.442695
        %v810 = vpow.pop %v809
        %v811 = vsel %vm694, %v810, 0.0
        %812 = vadd.xlane.f32.xlu0 %v811
        %v813 = vpop.xlane.xlu0 %812
        %v814 = vrcp.pop %v813
        %v815 = vmul.f32 %v810, %v814
        %v816 = vpack.c.bf16 %v815, %v815
        %s817 = scalar_lea.vmem %s442, 4 [#allocation11]
        %818 = vst.msk [vmem:[%s817] sm:$0xf] %vm707, %v816
        %820 = vrot.lane.b32.xlu0 %v646, 120
        %v821 = vpop.permute.xlu0 %820
        %v824 = vsel %vm694, %v816, 0
        %826 = vmatprep.subr.bf16.mxu0 0
        %827 = vmatpush1.bf16.msra.mxu0 %v821
        %828 = vmatprep.subr.bf16.mxu0 0
        %829 = vmatpush1.bf16.msra.mxu0 0
        %830 = vmatprep.subr.bf16.mxu0 0
        %831 = vmatpush1.bf16.msra.mxu0 0
        %832 = vmatprep.subr.bf16.mxu0 0
        %833 = vmatpush1.bf16.msra.mxu0 0
        %834 = vmatprep.subr.bf16.mxu0 0
        %835 = vmatpush1.bf16.msra.mxu0 0
        %836 = vmatprep.subr.bf16.mxu0 0
        %837 = vmatpush1.bf16.msra.mxu0 0
        %838 = vmatprep.subr.bf16.mxu0 0
        %839 = vmatpush1.bf16.msra.mxu0 0
        %840 = vmatprep.subr.bf16.mxu0 0
        %841 = vmatpush1.bf16.msra.mxu0 0
        %842 = vmatprep.subr.bf16.mxu0 0
        %843 = vmatpush1.bf16.msra.mxu0 0
        %844 = vmatprep.subr.bf16.mxu0 0
        %845 = vmatpush1.bf16.msra.mxu0 0
        %846 = vmatprep.subr.bf16.mxu0 0
        %847 = vmatpush1.bf16.msra.mxu0 0
        %848 = vmatprep.subr.bf16.mxu0 0
        %849 = vmatpush1.bf16.msra.mxu0 0
        %850 = vmatprep.subr.bf16.mxu0 0
        %851 = vmatpush1.bf16.msra.mxu0 0
        %852 = vmatprep.subr.bf16.mxu0 0
        %853 = vmatpush1.bf16.msra.mxu0 0
        %854 = vmatprep.subr.bf16.mxu0 0
        %855 = vmatpush1.bf16.msra.mxu0 0
        %856 = vmatprep.subr.bf16.mxu0 0
        %857 = vmatpush1.bf16.msra.mxu0 0
        %858 = vmatprep.mubr.bf16.mxu0 0
        %859 = vmatmul.mubr.bf16.gmra.mrb[0].mxu0 %v824
        %v860 = vpop.f32.mrb[0].mxu0
        %v861 = vadd.f32 0.0, %v860
        %v862 = vpop.f32.mrb[0].mxu0
        %v863 = vpop.f32.mrb[0].mxu0
        %v864 = vpop.f32.mrb[0].mxu0
        %865 = vdwg.mxu0
        %v866 = vpack.c.bf16 %v861, %v861
        %867 = vrot.lane.b32.xlu0 %v644, 112
        %v868 = vpop.permute.xlu0 %867
        %869 = vrot.lane.b32.xlu0 %v645, 112
        %v870 = vpop.permute.xlu0 %869
        %v872 = vsel %vm647, %v868, 0
        %v875 = vsel %vm647, %v870, 0
        %877 = vmatprep.subr.bf16.mxu0 0
        %878 = vmatpush1.bf16.xpose.msra.mxu0 %v875
        %879 = vmatprep.subr.bf16.mxu0 0
        %880 = vmatpush1.bf16.xpose.msra.mxu0 0
        %881 = vmatprep.subr.bf16.mxu0 0
        %882 = vmatpush1.bf16.xpose.msra.mxu0 0
        %883 = vmatprep.subr.bf16.mxu0 0
        %884 = vmatpush1.bf16.xpose.msra.mxu0 0
        %885 = vmatprep.subr.bf16.mxu0 0
        %886 = vmatpush1.bf16.xpose.msra.mxu0 0
        %887 = vmatprep.subr.bf16.mxu0 0
        %888 = vmatpush1.bf16.xpose.msra.mxu0 0
        %889 = vmatprep.subr.bf16.mxu0 0
        %890 = vmatpush1.bf16.xpose.msra.mxu0 0
        %891 = vmatprep.subr.bf16.mxu0 0
        %892 = vmatpush1.bf16.xpose.msra.mxu0 0
        %893 = vmatprep.subr.bf16.mxu0 0
        %894 = vmatpush1.bf16.xpose.msra.mxu0 0
        %895 = vmatprep.subr.bf16.mxu0 0
        %896 = vmatpush1.bf16.xpose.msra.mxu0 0
        %897 = vmatprep.subr.bf16.mxu0 0
        %898 = vmatpush1.bf16.xpose.msra.mxu0 0
        %899 = vmatprep.subr.bf16.mxu0 0
        %900 = vmatpush1.bf16.xpose.msra.mxu0 0
        %901 = vmatprep.subr.bf16.mxu0 0
        %902 = vmatpush1.bf16.xpose.msra.mxu0 0
        %903 = vmatprep.subr.bf16.mxu0 0
        %904 = vmatpush1.bf16.xpose.msra.mxu0 0
        %905 = vmatprep.subr.bf16.mxu0 0
        %906 = vmatpush1.bf16.xpose.msra.mxu0 0
        %907 = vmatprep.subr.bf16.mxu0 0
        %908 = vmatpush1.bf16.xpose.msra.mxu0 0
        %909 = vmatprep.mubr.bf16.mxu0 0
        %910 = vmatmul.mubr.bf16.gmra.mrb[0].mxu0 %v872
        %v911 = vpop.f32.mrb[0].mxu0
        %v912 = vadd.f32 0.0, %v911
        %v913 = vpop.f32.mrb[0].mxu0
        %v914 = vpop.f32.mrb[0].mxu0
        %v915 = vpop.f32.mrb[0].mxu0
        %916 = vdwg.mxu0
        %v917 = vsel %vm694, %v912, -inf
        %918 = vmax.xlane.f32.xlu0 %v917
        %v919 = vpop.xlane.xlu0 %918
        %v920 = vsub.f32 %v912, %v919
        %v921 = vmul.f32 %v920, 1.442695
        %v922 = vpow.pop %v921
        %v923 = vsel %vm694, %v922, 0.0
        %924 = vadd.xlane.f32.xlu0 %v923
        %v925 = vpop.xlane.xlu0 %924
        %v926 = vrcp.pop %v925
        %v927 = vmul.f32 %v922, %v926
        %v928 = vpack.c.bf16 %v927, %v927
        %s929 = scalar_lea.vmem %s442, 8 [#allocation11]
        %930 = vst.msk [vmem:[%s929] sm:$0xf] %vm707, %v928
        %931 = vrot.lane.b32.xlu0 %v646, 112
        %v932 = vpop.permute.xlu0 %931
        %v935 = vsel %vm694, %v928, 0
        %937 = vmatprep.subr.bf16.mxu0 0
        %938 = vmatpush1.bf16.msra.mxu0 %v932
        %939 = vmatprep.subr.bf16.mxu0 0
        %940 = vmatpush1.bf16.msra.mxu0 0
        %941 = vmatprep.subr.bf16.mxu0 0
        %942 = vmatpush1.bf16.msra.mxu0 0
        %943 = vmatprep.subr.bf16.mxu0 0
        %944 = vmatpush1.bf16.msra.mxu0 0
        %945 = vmatprep.subr.bf16.mxu0 0
        %946 = vmatpush1.bf16.msra.mxu0 0
        %947 = vmatprep.subr.bf16.mxu0 0
        %948 = vmatpush1.bf16.msra.mxu0 0
        %949 = vmatprep.subr.bf16.mxu0 0
        %950 = vmatpush1.bf16.msra.mxu0 0
        %951 = vmatprep.subr.bf16.mxu0 0
        %952 = vmatpush1.bf16.msra.mxu0 0
        %953 = vmatprep.subr.bf16.mxu0 0
        %954 = vmatpush1.bf16.msra.mxu0 0
        %955 = vmatprep.subr.bf16.mxu0 0
        %956 = vmatpush1.bf16.msra.mxu0 0
        %957 = vmatprep.subr.bf16.mxu0 0
        %958 = vmatpush1.bf16.msra.mxu0 0
        %959 = vmatprep.subr.bf16.mxu0 0
        %960 = vmatpush1.bf16.msra.mxu0 0
        %961 = vmatprep.subr.bf16.mxu0 0
        %962 = vmatpush1.bf16.msra.mxu0 0
        %963 = vmatprep.subr.bf16.mxu0 0
        %964 = vmatpush1.bf16.msra.mxu0 0
        %965 = vmatprep.subr.bf16.mxu0 0
        %966 = vmatpush1.bf16.msra.mxu0 0
        %967 = vmatprep.subr.bf16.mxu0 0
        %968 = vmatpush1.bf16.msra.mxu0 0
        %969 = vmatprep.mubr.bf16.mxu0 0
        %970 = vmatmul.mubr.bf16.gmra.mrb[0].mxu0 %v935
        %v971 = vpop.f32.mrb[0].mxu0
        %v972 = vadd.f32 0.0, %v971
        %v973 = vpop.f32.mrb[0].mxu0
        %v974 = vpop.f32.mrb[0].mxu0
        %v975 = vpop.f32.mrb[0].mxu0
        %976 = vdwg.mxu0
        %v977 = vpack.c.bf16 %v972, %v972
        %978 = vrot.lane.b32.xlu0 %v644, 104
        %v979 = vpop.permute.xlu0 %978
        %980 = vrot.lane.b32.xlu0 %v645, 104
        %v981 = vpop.permute.xlu0 %980
        %v983 = vsel %vm647, %v979, 0
        %v986 = vsel %vm647, %v981, 0
        %988 = vmatprep.subr.bf16.mxu0 0
        %989 = vmatpush1.bf16.xpose.msra.mxu0 %v986
        %990 = vmatprep.subr.bf16.mxu0 0
        %991 = vmatpush1.bf16.xpose.msra.mxu0 0
        %992 = vmatprep.subr.bf16.mxu0 0
        %993 = vmatpush1.bf16.xpose.msra.mxu0 0
        %994 = vmatprep.subr.bf16.mxu0 0
        %995 = vmatpush1.bf16.xpose.msra.mxu0 0
        %996 = vmatprep.subr.bf16.mxu0 0
        %997 = vmatpush1.bf16.xpose.msra.mxu0 0
        %998 = vmatprep.subr.bf16.mxu0 0
        %999 = vmatpush1.bf16.xpose.msra.mxu0 0
        %1000 = vmatprep.subr.bf16.mxu0 0
        %1001 = vmatpush1.bf16.xpose.msra.mxu0 0
        %1002 = vmatprep.subr.bf16.mxu0 0
        %1003 = vmatpush1.bf16.xpose.msra.mxu0 0
        %1004 = vmatprep.subr.bf16.mxu0 0
        %1005 = vmatpush1.bf16.xpose.msra.mxu0 0
        %1006 = vmatprep.subr.bf16.mxu0 0
        %1007 = vmatpush1.bf16.xpose.msra.mxu0 0
        %1008 = vmatprep.subr.bf16.mxu0 0
        %1009 = vmatpush1.bf16.xpose.msra.mxu0 0
        %1010 = vmatprep.subr.bf16.mxu0 0
        %1011 = vmatpush1.bf16.xpose.msra.mxu0 0
        %1012 = vmatprep.subr.bf16.mxu0 0
        %1013 = vmatpush1.bf16.xpose.msra.mxu0 0
        %1014 = vmatprep.subr.bf16.mxu0 0
        %1015 = vmatpush1.bf16.xpose.msra.mxu0 0
        %1016 = vmatprep.subr.bf16.mxu0 0
        %1017 = vmatpush1.bf16.xpose.msra.mxu0 0
        %1018 = vmatprep.subr.bf16.mxu0 0
        %1019 = vmatpush1.bf16.xpose.msra.mxu0 0
        %1020 = vmatprep.mubr.bf16.mxu0 0
        %1021 = vmatmul.mubr.bf16.gmra.mrb[0].mxu0 %v983
        %v1022 = vpop.f32.mrb[0].mxu0
        %v1023 = vadd.f32 0.0, %v1022
        %v1024 = vpop.f32.mrb[0].mxu0
        %v1025 = vpop.f32.mrb[0].mxu0
        %v1026 = vpop.f32.mrb[0].mxu0
        %1027 = vdwg.mxu0
        %v1028 = vsel %vm694, %v1023, -inf
        %1029 = vmax.xlane.f32.xlu0 %v1028
        %v1030 = vpop.xlane.xlu0 %1029
        %v1031 = vsub.f32 %v1023, %v1030
        %v1032 = vmul.f32 %v1031, 1.442695
        %v1033 = vpow.pop %v1032
        %v1034 = vsel %vm694, %v1033, 0.0
        %1035 = vadd.xlane.f32.xlu0 %v1034
        %v1036 = vpop.xlane.xlu0 %1035
        %v1037 = vrcp.pop %v1036
        %v1038 = vmul.f32 %v1033, %v1037
        %v1039 = vpack.c.bf16 %v1038, %v1038
        %s1040 = scalar_lea.vmem %s442, 12 [#allocation11]
        %1041 = vst.msk [vmem:[%s1040] sm:$0xf] %vm707, %v1039
        %1042 = vrot.lane.b32.xlu0 %v646, 104
        %v1043 = vpop.permute.xlu0 %1042
        %v1046 = vsel %vm694, %v1039, 0
        %1048 = vmatprep.subr.bf16.mxu0 0
        %1049 = vmatpush1.bf16.msra.mxu0 %v1043
        %1050 = vmatprep.subr.bf16.mxu0 0
        %1051 = vmatpush1.bf16.msra.mxu0 0
        %1052 = vmatprep.subr.bf16.mxu0 0
        %1053 = vmatpush1.bf16.msra.mxu0 0
        %1054 = vmatprep.subr.bf16.mxu0 0
        %1055 = vmatpush1.bf16.msra.mxu0 0
        %1056 = vmatprep.subr.bf16.mxu0 0
        %1057 = vmatpush1.bf16.msra.mxu0 0
        %1058 = vmatprep.subr.bf16.mxu0 0
        %1059 = vmatpush1.bf16.msra.mxu0 0
        %1060 = vmatprep.subr.bf16.mxu0 0
        %1061 = vmatpush1.bf16.msra.mxu0 0
        %1062 = vmatprep.subr.bf16.mxu0 0
        %1063 = vmatpush1.bf16.msra.mxu0 0
        %1064 = vmatprep.subr.bf16.mxu0 0
        %1065 = vmatpush1.bf16.msra.mxu0 0
        %1066 = vmatprep.subr.bf16.mxu0 0
        %1067 = vmatpush1.bf16.msra.mxu0 0
        %1068 = vmatprep.subr.bf16.mxu0 0
        %1069 = vmatpush1.bf16.msra.mxu0 0
        %1070 = vmatprep.subr.bf16.mxu0 0
        %1071 = vmatpush1.bf16.msra.mxu0 0
        %1072 = vmatprep.subr.bf16.mxu0 0
        %1073 = vmatpush1.bf16.msra.mxu0 0
        %1074 = vmatprep.subr.bf16.mxu0 0
        %1075 = vmatpush1.bf16.msra.mxu0 0
        %1076 = vmatprep.subr.bf16.mxu0 0
        %1077 = vmatpush1.bf16.msra.mxu0 0
        %1078 = vmatprep.subr.bf16.mxu0 0
        %1079 = vmatpush1.bf16.msra.mxu0 0
        %1080 = vmatprep.mubr.bf16.mxu0 0
        %1081 = vmatmul.mubr.bf16.gmra.mrb[0].mxu0 %v1046
        %v1082 = vpop.f32.mrb[0].mxu0
        %v1083 = vadd.f32 0.0, %v1082
        %v1084 = vpop.f32.mrb[0].mxu0
        %v1085 = vpop.f32.mrb[0].mxu0
        %v1086 = vpop.f32.mrb[0].mxu0
        %1087 = vdwg.mxu0
        %v1088 = vpack.c.bf16 %v1083, %v1083
        %1090 = vrot.lane.b32.xlu0 %v866, 8
        %v1091 = vpop.permute.xlu0 %1090
        %1093 = vrot.lane.b32.xlu0 %v977, 16
        %v1094 = vpop.permute.xlu0 %1093
        %1096 = vrot.lane.b32.xlu0 %v1088, 24
        %v1097 = vpop.permute.xlu0 %1096
        %v1100 = vsel %vm647, %v752, %v1091
        %v1102 = vsel %vm694, %v1100, %v1094
        %vm1103 = vcmask 195584
        %v1105 = vsel %vm1103, %v1102, %v1097
        %v1106 = vld [vmem:[%s6] sm:$0xf]
        %v1107 = vld [vmem:[%s6 + $0x4] sm:$0xf]
        %v1108 = vld [vmem:[%s6 + $0x8] sm:$0xf]
        %v1109 = vld [vmem:[%s6 + $0xc] sm:$0xf]
        %v1110 = vld [vmem:[%s7] sm:$0x1]
        %v1112 = vlaneseq
        %v1113 = vshrl.u32 %v1112, 7
        %v1114 = vsub.s32 0, %v1113
        %v1115 = vrot.slane %v1110, %v1114
        %v1121 = vunpack.c.l.b16 %v1106
        %v1122 = vunpack.c.l.b16 %v1107
        %v1123 = vunpack.c.l.b16 %v1108
        %v1124 = vunpack.c.l.b16 %v1109
        %v1125 = vpack.c.b16 %v1122, %v1121
        %v1126 = vpack.c.b16 %v1124, %v1123
        %v1129 = vsel %vm470, %v1105, 0
        %1131 = vmatprep.subr.bf16.mxu0 0
        %1132 = vmatpush1.bf16.msra.mxu0 %v1125
        %1133 = vmatprep.subr.bf16.mxu0 0
        %1134 = vmatpush1.bf16.msra.mxu0 %v1126
        %1135 = vmatprep.subr.bf16.mxu0 0
        %1136 = vmatpush1.bf16.msra.mxu0 0
        %1137 = vmatprep.subr.bf16.mxu0 0
        %1138 = vmatpush1.bf16.msra.mxu0 0
        %1139 = vmatprep.subr.bf16.mxu0 0
        %1140 = vmatpush1.bf16.msra.mxu0 0
        %1141 = vmatprep.subr.bf16.mxu0 0
        %1142 = vmatpush1.bf16.msra.mxu0 0
        %1143 = vmatprep.subr.bf16.mxu0 0
        %1144 = vmatpush1.bf16.msra.mxu0 0
        %1145 = vmatprep.subr.bf16.mxu0 0
        %1146 = vmatpush1.bf16.msra.mxu0 0
        %1147 = vmatprep.subr.bf16.mxu0 0
        %1148 = vmatpush1.bf16.msra.mxu0 0
        %1149 = vmatprep.subr.bf16.mxu0 0
        %1150 = vmatpush1.bf16.msra.mxu0 0
        %1151 = vmatprep.subr.bf16.mxu0 0
        %1152 = vmatpush1.bf16.msra.mxu0 0
        %1153 = vmatprep.subr.bf16.mxu0 0
        %1154 = vmatpush1.bf16.msra.mxu0 0
        %1155 = vmatprep.subr.bf16.mxu0 0
        %1156 = vmatpush1.bf16.msra.mxu0 0
        %1157 = vmatprep.subr.bf16.mxu0 0
        %1158 = vmatpush1.bf16.msra.mxu0 0
        %1159 = vmatprep.subr.bf16.mxu0 0
        %1160 = vmatpush1.bf16.msra.mxu0 0
        %1161 = vmatprep.subr.bf16.mxu0 0
        %1162 = vmatpush1.bf16.msra.mxu0 0
        %1163 = vmatprep.mubr.bf16.mxu0 0
        %1164 = vmatmul.mubr.bf16.gmra.mrb[0].mxu0 %v1129
        %v1165 = vpop.f32.mrb[0].mxu0
        %v1166 = vadd.f32 %v1115, %v1165
        %v1167 = vpop.f32.mrb[0].mxu0
        %v1168 = vpop.f32.mrb[0].mxu0
        %v1169 = vpop.f32.mrb[0].mxu0
        %1170 = vdwg.mxu0
        %1171 = vst.msk [vmem:[%s435] sm:$0xff] %vm694, %v1166
        %s1172 = sand.u32 %s225, 1
        %s1173 = scalar_lea.sflag [#allocation4], %s1172
        %s1174 = sand.u32 %s225, 1
        %s1175 = smul.addr %s1174, 8
        %s1176 = scalar_lea.vmem [#allocation10], %s1175
        %s1177 = sand.u32 %s251, 1
        %s1178 = scalar_lea.sflag [#allocation12], %s1177
        %s1179 = sand.u32 %s251, 1
        %s1180 = smul.addr %s1179, 16
        %s1181 = scalar_lea.vmem [#allocation11], %s1180
        // Predicated region
        $region69: #{tpu_custom_call.1} parent=51 // pred_check
          %p1182 = pneg %p235
        $region70: #{tpu_custom_call.1} parent=51 // pred_check_branch
          %1184 = sbr.rel (%p1182) target = $region72
        $region71: #{tpu_custom_call.1} parent=51 // pred_region
          %s1186 = ssub.s32 128, 128
          %1187 = vsyncadd %s1173, %s1186
          %s1188 = smul.addr %s34, 128
          %s1189 = scalar_lea.hbm %s8, %s1188
          %s1191 = sshll.u32 %s1176, 4
          %s1192 = int_to_ptr.vmem [resolvable:$true] %s1191
          %1194 = dma.vmem_to_hbm [thread:$0]  %s1192, 128, %s1189, %s1173
        $region72: #{tpu_custom_call.1} parent=51 // pred_fallthru
          _
        // Predicated region
        $region73: #{tpu_custom_call.1} parent=51 // pred_check
          %p1195 = pneg %p261
        $region74: #{tpu_custom_call.1} parent=51 // pred_check_branch
          %1197 = sbr.rel (%p1195) target = $region76
        $region75: #{tpu_custom_call.1} parent=51 // pred_region
          %s1199 = ssub.s32 256, 256
          %1200 = vsyncadd %s1178, %s1199
          %s1201 = smul.addr %s34, 4
          %s1202 = smul.addr %s1201, 64
          %s1203 = scalar_lea.hbm %s9, %s1202
          %s1204 = sshll.u32 %s1181, 4
          %s1205 = int_to_ptr.vmem [resolvable:$true] %s1204
          %1210 = dma.vmem_to_hbm [thread:$0]  %s1205, 256, %s1203, %s1178, 64, 64, 4
        $region76: #{tpu_custom_call.1} parent=51 // pred_fallthru
          _
      $region52: #{tpu_custom_call.1} parent=5 // pred_fallthru
        _
      %p1211 = scmp.le.s32.totalorder 2, %s29
      // Predicated region
      $region77: #{tpu_custom_call.1} parent=5 // pred_check
        %p1212 = pneg %p1211
      $region78: #{tpu_custom_call.1} parent=5 // pred_check_branch
        %1214 = sbr.rel (%p1212) target = $region80
      $region79: #{tpu_custom_call.1} parent=5 // pred_region
        %s1215 = ssub.s32 %s29, 2
        // Predicated region
        $region81: #{tpu_custom_call.1} parent=79 // pred_check
          %p1216 = pneg %p241
        $region82: #{tpu_custom_call.1} parent=79 // pred_check_branch
          %1218 = sbr.rel (%p1216) target = $region84
        $region83: #{tpu_custom_call.1} parent=79 // pred_region
          %s1219 = sand.u32 %s226, 1
          %s1220 = scalar_lea.sflag [#allocation4], %s1219
          %s1221 = sand.u32 %s226, 1
          %s1222 = smul.addr %s1221, 8
          %s1223 = scalar_lea.vmem [#allocation10], %s1222
          %1224 = dma.done %s1220, 128
        $region84: #{tpu_custom_call.1} parent=79 // pred_fallthru
          _
        // Predicated region
        $region85: #{tpu_custom_call.1} parent=79 // pred_check
          %p1225 = pneg %p267
        $region86: #{tpu_custom_call.1} parent=79 // pred_check_branch
          %1227 = sbr.rel (%p1225) target = $region88
        $region87: #{tpu_custom_call.1} parent=79 // pred_region
          %s1228 = sand.u32 %s252, 1
          %s1229 = scalar_lea.sflag [#allocation12], %s1228
          %s1230 = sand.u32 %s252, 1
          %s1231 = smul.addr %s1230, 16
          %s1232 = scalar_lea.vmem [#allocation11], %s1231
          %1233 = dma.done %s1229, 256
        $region88: #{tpu_custom_call.1} parent=79 // pred_fallthru
          _
      $region80: #{tpu_custom_call.1} parent=5 // pred_fallthru
        _
    $region6: #{tpu_custom_call.1} parent=1 // loop_footer
      %s33 = sadd.s32 1, %s29
    $region7: #{tpu_custom_call.1} parent=1 // loop_footer_branch
      %28 = sbr.rel target = $region3
    $region8: #{tpu_custom_call.1} parent=1 // loop_exit
      _
    %1234 = vsyncpa [#allocation3], 1
    %s1235 = scalar_lea.sflag [#allocation3], 1
    %1236 = vsyncpa %s1235, 1
    %1237 = vsyncpa [#allocation6], 1
    %s1238 = scalar_lea.sflag [#allocation6], 1
    %1239 = vsyncpa %s1238, 1
    %1240 = vsyncpa [#allocation9], 1
    %1241 = vsyncpa [#allocation4], 1
    %s1242 = scalar_lea.sflag [#allocation4], 1
    %1243 = vsyncpa %s1242, 1
    %1244 = vsyncpa [#allocation12], 1
    %s1245 = scalar_lea.sflag [#allocation12], 1
    %1246 = vsyncpa %s1245, 1

</llo_original>
